<compile_context>
chip_gen: v5e
topology: v5e:2x2
jax: 0.10.0
libtpu: 0.0.40
codegen_flags: <defaults>
</compile_context>

<pallas_src>
import functools

import jax
import jax.numpy as jnp
import numpy as np
from jax.experimental import pallas as pl
from jax.experimental.pallas import tpu as pltpu


# ---------------------------------------------------------------------------
# Kernel: branch2 = 1x1 conv+BN+ReLU -> dw3x3 conv+BN -> 1x1 conv+BN+ReLU
# (BN scales pre-folded into weights; biases passed separately.)
# ---------------------------------------------------------------------------
def _branch2_kernel(x2_ref, w1_ref, wdw_ref, w3_ref, bias_ref, out_ref, hp_ref,
                    *, H, W, mm_dtype):
    Cp = w1_ref.shape[1]
    HW = H * W

    x2 = x2_ref[0]                                    # (HW, Cp), lane-dense
    bias = bias_ref[...]                              # (3, Cp)

    # ---- 1x1 conv (BN scale folded) + bias + ReLU -- full MXU tile -------
    h = jnp.dot(x2.astype(mm_dtype), w1_ref[...].astype(mm_dtype),
                preferred_element_type=jnp.float32)   # (HW, Cp)
    h = jnp.maximum(h + bias[0:1, :], 0.0)

    # ---- depthwise 3x3 (pad=1, BN scale folded) + bias, no ReLU ----------
    # zero-bordered VMEM scratch replaces the two jnp.concatenate pads.
    hp_ref[...] = jnp.zeros_like(hp_ref)
    hp_ref[1:H + 1, 1:W + 1, :] = h.reshape(H, W, Cp)

    wdw = wdw_ref[...]                                # (9, Cp)
    # hoist the 9 per-tap channel broadcasts out of the accumulation loop
    taps = [wdw[k:k + 1, :].reshape(1, 1, Cp) for k in range(9)]

    acc = hp_ref[0:H, 0:W, :] * taps[0]
    for k in range(1, 9):
        i, j = divmod(k, 3)
        acc = acc + hp_ref[i:i + H, j:j + W, :] * taps[k]
    h2 = (acc + bias[1:2, :].reshape(1, 1, Cp)).reshape(HW, Cp)

    # ---- 1x1 conv (BN scale folded) + bias + ReLU -------------------------
    h3 = jnp.dot(h2.astype(mm_dtype), w3_ref[...].astype(mm_dtype),
                 preferred_element_type=jnp.float32)
    out_ref[0] = jnp.maximum(h3 + bias[2:3, :], 0.0).astype(out_ref.dtype)


# ---------------------------------------------------------------------------
# Public wrapper: NCHW in / NCHW out, matching the PyTorch module.
# ---------------------------------------------------------------------------
def inverted_residual(x_nchw, params, matmul_dtype=jnp.float32):
    """x_nchw: (B, C, H, W) float32.  params: dict from fold_params()."""
    B, C, H, W = x_nchw.shape
    Cb = C // 2
    Cp = params["w1"].shape[0]              # channels padded to a lane multiple
    HW = H * W

    # x1 pass-through stays in NCHW and never enters the kernel.
    x1 = x_nchw[:, :Cb]

    # x2 -> NHWC, pad channels to Cp lanes, flatten spatial for lane-dense I/O.
    x2 = jnp.transpose(x_nchw[:, Cb:], (0, 2, 3, 1))           # (B, H, W, Cb)
    x2 = jnp.pad(x2, ((0, 0), (0, 0), (0, 0), (0, Cp - Cb)))   # (B, H, W, Cp)
    x2 = x2.reshape(B, HW, Cp)

    kernel = functools.partial(_branch2_kernel, H=H, W=W, mm_dtype=matmul_dtype)

    out_p = pl.pallas_call(
        kernel,
        out_shape=jax.ShapeDtypeStruct((B, HW, Cp), jnp.float32),
        grid=(B,),
        in_specs=[
            pl.BlockSpec((1, HW, Cp), lambda b: (b, 0, 0)),    # x2 activations
            pl.BlockSpec((Cp, Cp), lambda b: (0, 0)),          # w1 (scale-folded)
            pl.BlockSpec((9, Cp), lambda b: (0, 0)),           # dw 3x3 (scale-folded)
            pl.BlockSpec((Cp, Cp), lambda b: (0, 0)),          # w3 (scale-folded)
            pl.BlockSpec((3, Cp), lambda b: (0, 0)),           # biases (b1,b2,b3)
        ],
        out_specs=pl.BlockSpec((1, HW, Cp), lambda b: (b, 0, 0)),
        scratch_shapes=[pltpu.VMEM((H + 2, W + 2, Cp), jnp.float32)],
        compiler_params=pltpu.CompilerParams(
            dimension_semantics=("parallel",),
            vmem_limit_bytes=32 * 1024 * 1024),
    )(x2, params["w1"], params["wdw"], params["w3"], params["bias"])

    # branch2 back to NCHW (only half the tensor is ever transposed).
    b2 = out_p.reshape(B, H, W, Cp)[..., :Cb]
    b2 = jnp.transpose(b2, (0, 3, 1, 2))                        # (B, Cb, H, W)

    # concat(x1, branch2) + channel_shuffle(groups=2) == channel interleave,
    # done as a free reshape in the wrapper instead of in-kernel stacking.
    return jnp.stack([x1, b2], axis=2).reshape(B, C, H, W)


# ---------------------------------------------------------------------------
# Parameter construction / folding
# ---------------------------------------------------------------------------
def make_raw_params(channels, key):
    """Deterministic synthetic module parameters (conv weights + BN stats)."""
    Cb = channels // 2
    ks = jax.random.split(key, 6)

    def bn_params(k):
        k0, k1, k2, k3 = jax.random.split(k, 4)
        return dict(
            gamma=1.0 + 0.1 * jax.random.normal(k0, (Cb,), jnp.float32),
            beta=0.1 * jax.random.normal(k1, (Cb,), jnp.float32),
            mean=0.1 * jax.random.normal(k2, (Cb,), jnp.float32),
            var=jax.random.uniform(k3, (Cb,), jnp.float32, 0.5, 1.5),
        )

    w1 = 0.3 * jax.random.normal(ks[0], (Cb, Cb), jnp.float32)     # (in, out)
    wdw = 0.3 * jax.random.normal(ks[1], (3, 3, Cb), jnp.float32)  # depthwise
    w3 = 0.3 * jax.random.normal(ks[2], (Cb, Cb), jnp.float32)     # (in, out)
    return dict(w1=w1, wdw=wdw, w3=w3,
                bn1=bn_params(ks[3]), bn2=bn_params(ks[4]), bn3=bn_params(ks[5]))


def fold_params(raw, lane=128, eps=1e-5):
    """Fold BN scales into weights and zero-pad channels to a lane multiple."""
    Cb = raw["w1"].shape[0]
    Cp = ((Cb + lane - 1) // lane) * lane
    pad = Cp - Cb

    def fold_bn(p):
        s = p["gamma"] / jnp.sqrt(p["var"] + eps)
        b = p["beta"] - p["mean"] * s
        return s, b

    s1, b1 = fold_bn(raw["bn1"])
    s2, b2 = fold_bn(raw["bn2"])
    s3, b3 = fold_bn(raw["bn3"])

    w1 = jnp.pad(raw["w1"] * s1[None, :], ((0, pad), (0, pad)))
    w3 = jnp.pad(raw["w3"] * s3[None, :], ((0, pad), (0, pad)))
    wdw = jnp.pad((raw["wdw"] * s2[None, None, :]).reshape(9, Cb),
                  ((0, 0), (0, pad)))
    bias = jnp.stack([jnp.pad(b1, (0, pad)),
                      jnp.pad(b2, (0, pad)),
                      jnp.pad(b3, (0, pad))], axis=0)
    return dict(w1=w1, wdw=wdw, w3=w3, bias=bias)


# ---------------------------------------------------------------------------
# Pure-jnp reference (explicit BN, inference mode) for correctness checking
# ---------------------------------------------------------------------------
def reference(x_nchw, raw, eps=1e-5):
    B, C, H, W = x_nchw.shape
    Cb = C // 2
    x1 = x_nchw[:, :Cb]
    x2 = jnp.transpose(x_nchw[:, Cb:], (0, 2, 3, 1))

    def bn(v, p):
        return (v - p["mean"]) * (p["gamma"] / jnp.sqrt(p["var"] + eps)) + p["beta"]

    h = jnp.maximum(bn(jnp.einsum("bhwc,cd->bhwd", x2, raw["w1"]), raw["bn1"]), 0.0)
    hp = jnp.pad(h, ((0, 0), (1, 1), (1, 1), (0, 0)))
    acc = jnp.zeros_like(h)
    for i in range(3):
        for j in range(3):
            acc = acc + hp[:, i:i + H, j:j + W, :] * raw["wdw"][i, j]
    h2 = bn(acc, raw["bn2"])
    h3 = jnp.maximum(bn(jnp.einsum("bhwc,cd->bhwd", h2, raw["w3"]), raw["bn3"]), 0.0)
    b2 = jnp.transpose(h3, (0, 3, 1, 2))                    # NCHW
    return jnp.stack([x1, b2], axis=2).reshape(B, C, H, W)  # shuffle(g=2)


if __name__ == "__main__":
    key = jax.random.PRNGKey(0)
    k_x, k_p = jax.random.split(key)

    B, C, H, W = 2, 8, 16, 16          # channels=8 -> branch_features=4
    x = jax.random.normal(k_x, (B, C, H, W), jnp.float32)
    raw = make_raw_params(C, k_p)
    params = fold_params(raw)

    out = jax.block_until_ready(inverted_residual(x, params))
    ref = jax.block_until_ready(reference(x, raw))

    assert out.shape == (B, C, H, W)
    np.testing.assert_allclose(np.asarray(out), np.asarray(ref),
                               rtol=1e-4, atol=1e-4)
    print("KERNEL_OK")
</pallas_src>

<mosaic_0001>
module attributes {stable_mosaic.version = 11 : i64} {
  func.func @_branch2_kernel(%arg0: i32, %arg1: memref<1x256x128xf32, #tpu.memory_space<vmem>>, %arg2: memref<128x128xf32, #tpu.memory_space<vmem>>, %arg3: memref<9x128xf32, #tpu.memory_space<vmem>>, %arg4: memref<128x128xf32, #tpu.memory_space<vmem>>, %arg5: memref<3x128xf32, #tpu.memory_space<vmem>>, %arg6: memref<1x256x128xf32, #tpu.memory_space<vmem>>, %arg7: memref<18x18x128xf32, #tpu.memory_space<vmem>>) attributes {dimension_semantics = [#tpu.dimension_semantics<parallel>], iteration_bounds = array<i64: 2>, scalar_prefetch = 0 : i64, scratch_operands = 1 : i64, tpu.core_type = #tpu.core_type<tc>, window_params = [{transform_indices = @transform_0, window_bounds = array<i64: 1, 256, 128>}, {pipeline_mode = #tpu.pipeline_mode<synchronous>, transform_indices = @transform_1, window_bounds = array<i64: 128, 128>}, {pipeline_mode = #tpu.pipeline_mode<synchronous>, transform_indices = @transform_2, window_bounds = array<i64: 9, 128>}, {pipeline_mode = #tpu.pipeline_mode<synchronous>, transform_indices = @transform_3, window_bounds = array<i64: 128, 128>}, {pipeline_mode = #tpu.pipeline_mode<synchronous>, transform_indices = @transform_4, window_bounds = array<i64: 3, 128>}, {transform_indices = @transform_5, window_bounds = array<i64: 1, 256, 128>}]} {
    %c0 = arith.constant 0 : index
    %c0_0 = arith.constant 0 : index
    %c0_1 = arith.constant 0 : index
    %0 = vector.load %arg1[%c0, %c0_0, %c0_1] : memref<1x256x128xf32, #tpu.memory_space<vmem>>, vector<1x256x128xf32>
    %1 = vector.shape_cast %0 : vector<1x256x128xf32> to vector<256x128xf32>
    %c0_2 = arith.constant 0 : index
    %c0_3 = arith.constant 0 : index
    %2 = vector.load %arg5[%c0_2, %c0_3] : memref<3x128xf32, #tpu.memory_space<vmem>>, vector<3x128xf32>
    %c0_4 = arith.constant 0 : index
    %c0_5 = arith.constant 0 : index
    %3 = vector.load %arg2[%c0_4, %c0_5] : memref<128x128xf32, #tpu.memory_space<vmem>>, vector<128x128xf32>
    %cst = arith.constant dense<0.000000e+00> : vector<256x128xf32>
    %4 = tpu.matmul %1, %3, %cst {dimension_numbers = #tpu.dot_dimension_numbers<[1], [0], [0], [1], [0, 0, 1, 1], [], []>} : vector<256x128xf32>, vector<128x128xf32>, vector<256x128xf32> -> vector<256x128xf32>
    %5 = vector.extract_strided_slice %2 {offsets = [0, 0], sizes = [1, 128], strides = [1, 1]} : vector<3x128xf32> to vector<1x128xf32>
    %6 = vector.broadcast %5 : vector<1x128xf32> to vector<256x128xf32>
    %7 = arith.addf %4, %6 : vector<256x128xf32>
    %cst_6 = arith.constant 0.000000e+00 : f32
    %8 = vector.broadcast %cst_6 : f32 to vector<256x128xf32>
    %9 = arith.maximumf %7, %8 : vector<256x128xf32>
    %cst_7 = arith.constant 0.000000e+00 : f32
    %10 = vector.broadcast %cst_7 : f32 to vector<18x18x128xf32>
    %c0_8 = arith.constant 0 : index
    %c0_9 = arith.constant 0 : index
    %c0_10 = arith.constant 0 : index
    %11 = vector.load %arg7[%c0_8, %c0_9, %c0_10] : memref<18x18x128xf32, #tpu.memory_space<vmem>>, vector<18x18x128xf32>
    tpu.vector_store %arg7[%c0_8, %c0_9, %c0_10], %10 {strides = array<i32>} : memref<18x18x128xf32, #tpu.memory_space<vmem>>, vector<18x18x128xf32>,
    %12 = vector.shape_cast %9 : vector<256x128xf32> to vector<16x16x128xf32>
    %c1 = arith.constant 1 : index
    %c1_11 = arith.constant 1 : index
    %c0_12 = arith.constant 0 : index
    %13 = vector.load %arg7[%c1, %c1_11, %c0_12] : memref<18x18x128xf32, #tpu.memory_space<vmem>>, vector<16x16x128xf32>
    tpu.vector_store %arg7[%c1, %c1_11, %c0_12], %12 {strides = array<i32>} : memref<18x18x128xf32, #tpu.memory_space<vmem>>, vector<16x16x128xf32>,
    %c0_13 = arith.constant 0 : index
    %c0_14 = arith.constant 0 : index
    %14 = vector.load %arg3[%c0_13, %c0_14] : memref<9x128xf32, #tpu.memory_space<vmem>>, vector<9x128xf32>
    %15 = vector.extract_strided_slice %14 {offsets = [0, 0], sizes = [1, 128], strides = [1, 1]} : vector<9x128xf32> to vector<1x128xf32>
    %16 = vector.shape_cast %15 : vector<1x128xf32> to vector<1x1x128xf32>
    %17 = vector.extract_strided_slice %14 {offsets = [1, 0], sizes = [1, 128], strides = [1, 1]} : vector<9x128xf32> to vector<1x128xf32>
    %18 = vector.shape_cast %17 : vector<1x128xf32> to vector<1x1x128xf32>
    %19 = vector.extract_strided_slice %14 {offsets = [2, 0], sizes = [1, 128], strides = [1, 1]} : vector<9x128xf32> to vector<1x128xf32>
    %20 = vector.shape_cast %19 : vector<1x128xf32> to vector<1x1x128xf32>
    %21 = vector.extract_strided_slice %14 {offsets = [3, 0], sizes = [1, 128], strides = [1, 1]} : vector<9x128xf32> to vector<1x128xf32>
    %22 = vector.shape_cast %21 : vector<1x128xf32> to vector<1x1x128xf32>
    %23 = vector.extract_strided_slice %14 {offsets = [4, 0], sizes = [1, 128], strides = [1, 1]} : vector<9x128xf32> to vector<1x128xf32>
    %24 = vector.shape_cast %23 : vector<1x128xf32> to vector<1x1x128xf32>
    %25 = vector.extract_strided_slice %14 {offsets = [5, 0], sizes = [1, 128], strides = [1, 1]} : vector<9x128xf32> to vector<1x128xf32>
    %26 = vector.shape_cast %25 : vector<1x128xf32> to vector<1x1x128xf32>
    %27 = vector.extract_strided_slice %14 {offsets = [6, 0], sizes = [1, 128], strides = [1, 1]} : vector<9x128xf32> to vector<1x128xf32>
    %28 = vector.shape_cast %27 : vector<1x128xf32> to vector<1x1x128xf32>
    %29 = vector.extract_strided_slice %14 {offsets = [7, 0], sizes = [1, 128], strides = [1, 1]} : vector<9x128xf32> to vector<1x128xf32>
    %30 = vector.shape_cast %29 : vector<1x128xf32> to vector<1x1x128xf32>
    %31 = vector.extract_strided_slice %14 {offsets = [8, 0], sizes = [1, 128], strides = [1, 1]} : vector<9x128xf32> to vector<1x128xf32>
    %32 = vector.shape_cast %31 : vector<1x128xf32> to vector<1x1x128xf32>
    %c0_15 = arith.constant 0 : index
    %c0_16 = arith.constant 0 : index
    %c0_17 = arith.constant 0 : index
    %33 = vector.load %arg7[%c0_15, %c0_16, %c0_17] : memref<18x18x128xf32, #tpu.memory_space<vmem>>, vector<16x16x128xf32>
    %34 = vector.broadcast %16 : vector<1x1x128xf32> to vector<16x16x128xf32>
    %35 = arith.mulf %33, %34 : vector<16x16x128xf32>
    %c0_18 = arith.constant 0 : index
    %c1_19 = arith.constant 1 : index
    %c0_20 = arith.constant 0 : index
    %36 = vector.load %arg7[%c0_18, %c1_19, %c0_20] : memref<18x18x128xf32, #tpu.memory_space<vmem>>, vector<16x16x128xf32>
    %37 = vector.broadcast %18 : vector<1x1x128xf32> to vector<16x16x128xf32>
    %38 = arith.mulf %36, %37 : vector<16x16x128xf32>
    %39 = arith.addf %35, %38 : vector<16x16x128xf32>
    %c0_21 = arith.constant 0 : index
    %c2 = arith.constant 2 : index
    %c0_22 = arith.constant 0 : index
    %40 = vector.load %arg7[%c0_21, %c2, %c0_22] : memref<18x18x128xf32, #tpu.memory_space<vmem>>, vector<16x16x128xf32>
    %41 = vector.broadcast %20 : vector<1x1x128xf32> to vector<16x16x128xf32>
    %42 = arith.mulf %40, %41 : vector<16x16x128xf32>
    %43 = arith.addf %39, %42 : vector<16x16x128xf32>
    %c1_23 = arith.constant 1 : index
    %c0_24 = arith.constant 0 : index
    %c0_25 = arith.constant 0 : index
    %44 = vector.load %arg7[%c1_23, %c0_24, %c0_25] : memref<18x18x128xf32, #tpu.memory_space<vmem>>, vector<16x16x128xf32>
    %45 = vector.broadcast %22 : vector<1x1x128xf32> to vector<16x16x128xf32>
    %46 = arith.mulf %44, %45 : vector<16x16x128xf32>
    %47 = arith.addf %43, %46 : vector<16x16x128xf32>
    %c1_26 = arith.constant 1 : index
    %c1_27 = arith.constant 1 : index
    %c0_28 = arith.constant 0 : index
    %48 = vector.load %arg7[%c1_26, %c1_27, %c0_28] : memref<18x18x128xf32, #tpu.memory_space<vmem>>, vector<16x16x128xf32>
    %49 = vector.broadcast %24 : vector<1x1x128xf32> to vector<16x16x128xf32>
    %50 = arith.mulf %48, %49 : vector<16x16x128xf32>
    %51 = arith.addf %47, %50 : vector<16x16x128xf32>
    %c1_29 = arith.constant 1 : index
    %c2_30 = arith.constant 2 : index
    %c0_31 = arith.constant 0 : index
    %52 = vector.load %arg7[%c1_29, %c2_30, %c0_31] : memref<18x18x128xf32, #tpu.memory_space<vmem>>, vector<16x16x128xf32>
    %53 = vector.broadcast %26 : vector<1x1x128xf32> to vector<16x16x128xf32>
    %54 = arith.mulf %52, %53 : vector<16x16x128xf32>
    %55 = arith.addf %51, %54 : vector<16x16x128xf32>
    %c2_32 = arith.constant 2 : index
    %c0_33 = arith.constant 0 : index
    %c0_34 = arith.constant 0 : index
    %56 = vector.load %arg7[%c2_32, %c0_33, %c0_34] : memref<18x18x128xf32, #tpu.memory_space<vmem>>, vector<16x16x128xf32>
    %57 = vector.broadcast %28 : vector<1x1x128xf32> to vector<16x16x128xf32>
    %58 = arith.mulf %56, %57 : vector<16x16x128xf32>
    %59 = arith.addf %55, %58 : vector<16x16x128xf32>
    %c2_35 = arith.constant 2 : index
    %c1_36 = arith.constant 1 : index
    %c0_37 = arith.constant 0 : index
    %60 = vector.load %arg7[%c2_35, %c1_36, %c0_37] : memref<18x18x128xf32, #tpu.memory_space<vmem>>, vector<16x16x128xf32>
    %61 = vector.broadcast %30 : vector<1x1x128xf32> to vector<16x16x128xf32>
    %62 = arith.mulf %60, %61 : vector<16x16x128xf32>
    %63 = arith.addf %59, %62 : vector<16x16x128xf32>
    %c2_38 = arith.constant 2 : index
    %c2_39 = arith.constant 2 : index
    %c0_40 = arith.constant 0 : index
    %64 = vector.load %arg7[%c2_38, %c2_39, %c0_40] : memref<18x18x128xf32, #tpu.memory_space<vmem>>, vector<16x16x128xf32>
    %65 = vector.broadcast %32 : vector<1x1x128xf32> to vector<16x16x128xf32>
    %66 = arith.mulf %64, %65 : vector<16x16x128xf32>
    %67 = arith.addf %63, %66 : vector<16x16x128xf32>
    %68 = vector.extract_strided_slice %2 {offsets = [1, 0], sizes = [1, 128], strides = [1, 1]} : vector<3x128xf32> to vector<1x128xf32>
    %69 = vector.shape_cast %68 : vector<1x128xf32> to vector<1x1x128xf32>
    %70 = vector.broadcast %69 : vector<1x1x128xf32> to vector<16x16x128xf32>
    %71 = arith.addf %67, %70 : vector<16x16x128xf32>
    %72 = vector.shape_cast %71 : vector<16x16x128xf32> to vector<256x128xf32>
    %c0_41 = arith.constant 0 : index
    %c0_42 = arith.constant 0 : index
    %73 = vector.load %arg4[%c0_41, %c0_42] : memref<128x128xf32, #tpu.memory_space<vmem>>, vector<128x128xf32>
    %cst_43 = arith.constant dense<0.000000e+00> : vector<256x128xf32>
    %74 = tpu.matmul %72, %73, %cst_43 {dimension_numbers = #tpu.dot_dimension_numbers<[1], [0], [0], [1], [0, 0, 1, 1], [], []>} : vector<256x128xf32>, vector<128x128xf32>, vector<256x128xf32> -> vector<256x128xf32>
    %75 = vector.extract_strided_slice %2 {offsets = [2, 0], sizes = [1, 128], strides = [1, 1]} : vector<3x128xf32> to vector<1x128xf32>
    %76 = vector.broadcast %75 : vector<1x128xf32> to vector<256x128xf32>
    %77 = arith.addf %74, %76 : vector<256x128xf32>
    %cst_44 = arith.constant 0.000000e+00 : f32
    %78 = vector.broadcast %cst_44 : f32 to vector<256x128xf32>
    %79 = arith.maximumf %77, %78 : vector<256x128xf32>
    %c0_45 = arith.constant 0 : index
    %c0_46 = arith.constant 0 : index
    %c0_47 = arith.constant 0 : index
    %80 = vector.load %arg6[%c0_45, %c0_46, %c0_47] : memref<1x256x128xf32, #tpu.memory_space<vmem>>, vector<1x256x128xf32>
    %81 = vector.shape_cast %80 : vector<1x256x128xf32> to vector<256x128xf32>
    %82 = vector.shape_cast %79 : vector<256x128xf32> to vector<1x256x128xf32>
    tpu.vector_store %arg6[%c0_45, %c0_46, %c0_47], %82 {strides = array<i32>} : memref<1x256x128xf32, #tpu.memory_space<vmem>>, vector<1x256x128xf32>,
    return
  }
  func.func @transform_0(%arg0: i32) -> (i32, i32, i32) {
    %c0_i32 = arith.constant 0 : i32
    %c0_i32_0 = arith.constant 0 : i32
    %c0_i32_1 = arith.constant 0 : i32
    return %arg0, %c0_i32, %c0_i32_0 : i32, i32, i32
  }
  func.func @transform_1(%arg0: i32) -> (i32, i32) {
    %c0_i32 = arith.constant 0 : i32
    %c0_i32_0 = arith.constant 0 : i32
    %c0_i32_1 = arith.constant 0 : i32
    return %c0_i32, %c0_i32_0 : i32, i32
  }
  func.func @transform_2(%arg0: i32) -> (i32, i32) {
    %c0_i32 = arith.constant 0 : i32
    %c0_i32_0 = arith.constant 0 : i32
    %c0_i32_1 = arith.constant 0 : i32
    return %c0_i32, %c0_i32_0 : i32, i32
  }
  func.func @transform_3(%arg0: i32) -> (i32, i32) {
    %c0_i32 = arith.constant 0 : i32
    %c0_i32_0 = arith.constant 0 : i32
    %c0_i32_1 = arith.constant 0 : i32
    return %c0_i32, %c0_i32_0 : i32, i32
  }
  func.func @transform_4(%arg0: i32) -> (i32, i32) {
    %c0_i32 = arith.constant 0 : i32
    %c0_i32_0 = arith.constant 0 : i32
    %c0_i32_1 = arith.constant 0 : i32
    return %c0_i32, %c0_i32_0 : i32, i32
  }
  func.func @transform_5(%arg0: i32) -> (i32, i32, i32) {
    %c0_i32 = arith.constant 0 : i32
    %c0_i32_0 = arith.constant 0 : i32
    %c0_i32_1 = arith.constant 0 : i32
    return %arg0, %c0_i32, %c0_i32_0 : i32, i32, i32
  }
}

</mosaic_0001>

<llo_original>
// kernel: tpu_custom_call.1
$region0: #{tpu_custom_call.1}
  #allocation0 [shape = 'u32[]', space=smem, size = 0x4, offset = 0x4, fixed_abs, tag = 'smem constant byte address 0x4 - core index']
  #allocation1 [shape = 'u32[72,128]{1,0:T(1,128)}', space=vmem, size = 0x9000, scoped, tag = 'internal scratch']
  #allocation2 [shape = 'f32[18,18,128]{2,1,0:T(8,128)}', space=vmem, size = 0x36000, scoped, tag = 'scratch operand']
  %s0 = inlined_call_operand.hbm [shape: f32[2,256,128], index: 0, kind: input, shape index: {}]
  %s1 = inlined_call_operand.hbm [shape: f32[128,128], index: 1, kind: input, shape index: {}]
  %s2 = inlined_call_operand.hbm [shape: f32[9,128], index: 2, kind: input, shape index: {}]
  %s3 = inlined_call_operand.hbm [shape: f32[128,128], index: 3, kind: input, shape index: {}]
  %s4 = inlined_call_operand.hbm [shape: f32[3,128], index: 4, kind: input, shape index: {}]
  %s5 = inlined_call_operand.hbm [shape: f32[2,256,128], index: 5, kind: output, shape index: {}]
  %s6 = sld [smem:[#allocation0]]
  $region73: #{tpu_custom_call.1} parent=0
    _
  %s8 = ssub.s32 1, %s6
  %s9 = scalar_select 0, %s8, %s6
  $region1: #{tpu_custom_call.1} parent=0
    #allocation3 [shape = 'u8[262144]{0}', space=vmem, size = 0x40000, scoped, tag = 'input window, operand 0']
    #allocation4 [shape = 's32[2]{0}', space=sflag, size = 0x8, scoped, tag = 'scoped memory for tpu_custom_call.1']
    #allocation5 [shape = 's32[2]{0}', space=sflag, size = 0x8, scoped, tag = 'scoped memory for tpu_custom_call.1']
    #allocation6 [shape = 'u8[65536]{0}', space=vmem, size = 0x10000, scoped, tag = 'input window, operand 1, single buffered']
    #allocation7 [shape = 's32[1]{0}', space=sflag, size = 0x4, scoped, tag = 'scoped memory for tpu_custom_call.1']
    #allocation8 [shape = 'u8[8192]{0}', space=vmem, size = 0x2000, scoped, tag = 'input window, operand 2, single buffered']
    #allocation9 [shape = 'u8[65536]{0}', space=vmem, size = 0x10000, scoped, tag = 'input window, operand 3, single buffered']
    #allocation10 [shape = 's32[1]{0}', space=sflag, size = 0x4, scoped, tag = 'scoped memory for tpu_custom_call.1']
    #allocation11 [shape = 'u8[2048]{0}', space=vmem, size = 0x800, scoped, tag = 'input window, operand 4, single buffered']
    #allocation12 [shape = 'u8[262144]{0}', space=vmem, size = 0x40000, scoped, tag = 'output window, operand 0']
    %10 = vsyncpa [#allocation4], 0
    %s11 = scalar_lea.sflag [#allocation4], 1
    %12 = vsyncpa %s11, 0
    %13 = vsyncpa [#allocation7], 0
    %14 = vsyncpa [#allocation10], 0
    %15 = vsyncpa [#allocation5], 0
    %s16 = scalar_lea.sflag [#allocation5], 1
    %17 = vsyncpa %s16, 0
    loop: start=0, step=1, limit=4
    $region2: #{tpu_custom_call.1} parent=1 // loop_pre_header
      _
    $region3: #{tpu_custom_call.1} parent=1 // loop_header
      %s19 = sphi 0, %s23
      %p20 = scmp.ge.s32.totalorder %s19, 4
      %s29 = sphi 0, %s31
      %s32 = sphi 0, %s29
      %s33 = sphi 0, %s32
      %s49 = sphi 0, %s33
      %s53 = sphi 0, %s53
      %s55 = sphi 0, %s53
      %s56 = sphi 0, %s55
      %s70 = sphi 0, %s56
      %s74 = sphi 0, %s74
      %s76 = sphi 0, %s74
      %s77 = sphi 0, %s76
      %s91 = sphi 0, %s77
      %s95 = sphi 0, %s95
      %s97 = sphi 0, %s95
      %s98 = sphi 0, %s97
      %s112 = sphi 0, %s98
      %s116 = sphi 0, %s116
      %s118 = sphi 0, %s116
      %s119 = sphi 0, %s118
      %s133 = sphi 0, %s119
      %s139 = sphi 0, %s141
      %s142 = sphi 0, %s139
      %s143 = sphi 0, %s142
      %s159 = sphi 0, %s143
    $region4: #{tpu_custom_call.1} parent=1 // loop_header_branch
      %22 = sbr.rel (%p20) target = $region8
    $region5: #{tpu_custom_call.1} parent=1 // loop_body
      %s24 = ssub.s32 %s19, 1
      %s25 = ssub.s32 %s19, 2
      %s26 = sadd.s32 %s19, 1
      %s27 = ssub.s32 %s19, %s26
      %p28 = scmp.eq.s32.totalorder %s27, 0
      %s30 = sadd.s32 %s29, 1
      %s31 = scalar_select %p28, %s29, %s30
      %p34 = pneg %p28
      %p35 = scmp.eq.s32.totalorder %s19, 1
      %p36 = por %p34, %p35
      %p37 = scmp.ne.s32.totalorder %s29, %s32
      %p38 = scmp.eq.s32.totalorder %s19, 0
      %p39 = por %p37, %p38
      %p40 = scmp.ne.s32.totalorder %s29, %s32
      %p41 = scmp.eq.s32.totalorder %s24, 1
      %p42 = por %p40, %p41
      %p43 = scmp.ne.s32.totalorder %s32, %s33
      %p44 = scmp.eq.s32.totalorder %s24, 0
      %p45 = por %p43, %p44
      %p46 = scmp.ne.s32.totalorder %s32, %s33
      %p47 = scmp.eq.s32.totalorder %s25, 1
      %p48 = por %p46, %p47
      %p50 = scmp.ne.s32.totalorder %s33, %s49
      %p51 = scmp.eq.s32.totalorder %s25, 0
      %p52 = por %p50, %p51
      %s54 = sadd.s32 %s53, 1
      %p57 = scmp.eq.s32.totalorder %s19, 1
      %p58 = scmp.ne.s32.totalorder %s53, %s55
      %p59 = scmp.eq.s32.totalorder %s19, 0
      %p60 = por %p58, %p59
      %p61 = scmp.ne.s32.totalorder %s53, %s55
      %p62 = scmp.eq.s32.totalorder %s24, 1
      %p63 = por %p61, %p62
      %p64 = scmp.ne.s32.totalorder %s55, %s56
      %p65 = scmp.eq.s32.totalorder %s24, 0
      %p66 = por %p64, %p65
      %p67 = scmp.ne.s32.totalorder %s55, %s56
      %p68 = scmp.eq.s32.totalorder %s25, 1
      %p69 = por %p67, %p68
      %p71 = scmp.ne.s32.totalorder %s56, %s70
      %p72 = scmp.eq.s32.totalorder %s25, 0
      %p73 = por %p71, %p72
      %s75 = sadd.s32 %s74, 1
      %p78 = scmp.eq.s32.totalorder %s19, 1
      %p79 = scmp.ne.s32.totalorder %s74, %s76
      %p80 = scmp.eq.s32.totalorder %s19, 0
      %p81 = por %p79, %p80
      %p82 = scmp.ne.s32.totalorder %s74, %s76
      %p83 = scmp.eq.s32.totalorder %s24, 1
      %p84 = por %p82, %p83
      %p85 = scmp.ne.s32.totalorder %s76, %s77
      %p86 = scmp.eq.s32.totalorder %s24, 0
      %p87 = por %p85, %p86
      %p88 = scmp.ne.s32.totalorder %s76, %s77
      %p89 = scmp.eq.s32.totalorder %s25, 1
      %p90 = por %p88, %p89
      %p92 = scmp.ne.s32.totalorder %s77, %s91
      %p93 = scmp.eq.s32.totalorder %s25, 0
      %p94 = por %p92, %p93
      %s96 = sadd.s32 %s95, 1
      %p99 = scmp.eq.s32.totalorder %s19, 1
      %p100 = scmp.ne.s32.totalorder %s95, %s97
      %p101 = scmp.eq.s32.totalorder %s19, 0
      %p102 = por %p100, %p101
      %p103 = scmp.ne.s32.totalorder %s95, %s97
      %p104 = scmp.eq.s32.totalorder %s24, 1
      %p105 = por %p103, %p104
      %p106 = scmp.ne.s32.totalorder %s97, %s98
      %p107 = scmp.eq.s32.totalorder %s24, 0
      %p108 = por %p106, %p107
      %p109 = scmp.ne.s32.totalorder %s97, %s98
      %p110 = scmp.eq.s32.totalorder %s25, 1
      %p111 = por %p109, %p110
      %p113 = scmp.ne.s32.totalorder %s98, %s112
      %p114 = scmp.eq.s32.totalorder %s25, 0
      %p115 = por %p113, %p114
      %s117 = sadd.s32 %s116, 1
      %p120 = scmp.eq.s32.totalorder %s19, 1
      %p121 = scmp.ne.s32.totalorder %s116, %s118
      %p122 = scmp.eq.s32.totalorder %s19, 0
      %p123 = por %p121, %p122
      %p124 = scmp.ne.s32.totalorder %s116, %s118
      %p125 = scmp.eq.s32.totalorder %s24, 1
      %p126 = por %p124, %p125
      %p127 = scmp.ne.s32.totalorder %s118, %s119
      %p128 = scmp.eq.s32.totalorder %s24, 0
      %p129 = por %p127, %p128
      %p130 = scmp.ne.s32.totalorder %s118, %s119
      %p131 = scmp.eq.s32.totalorder %s25, 1
      %p132 = por %p130, %p131
      %p134 = scmp.ne.s32.totalorder %s119, %s133
      %p135 = scmp.eq.s32.totalorder %s25, 0
      %p136 = por %p134, %p135
      %s137 = ssub.s32 %s19, %s26
      %p138 = scmp.eq.s32.totalorder %s137, 0
      %s140 = sadd.s32 %s139, 1
      %s141 = scalar_select %p138, %s139, %s140
      %p144 = pneg %p138
      %p145 = scmp.eq.s32.totalorder %s19, 1
      %p146 = por %p144, %p145
      %p147 = scmp.ne.s32.totalorder %s139, %s142
      %p148 = scmp.eq.s32.totalorder %s19, 0
      %p149 = por %p147, %p148
      %p150 = scmp.ne.s32.totalorder %s139, %s142
      %p151 = scmp.eq.s32.totalorder %s24, 1
      %p152 = por %p150, %p151
      %p153 = scmp.ne.s32.totalorder %s142, %s143
      %p154 = scmp.eq.s32.totalorder %s24, 0
      %p155 = por %p153, %p154
      %p156 = scmp.ne.s32.totalorder %s142, %s143
      %p157 = scmp.eq.s32.totalorder %s25, 1
      %p158 = por %p156, %p157
      %p160 = scmp.ne.s32.totalorder %s143, %s159
      %p161 = scmp.eq.s32.totalorder %s25, 0
      %p162 = por %p160, %p161
      %p163 = scmp.le.s32.totalorder 1, %s19
      %p164 = scmp.lt.s32.totalorder %s19, 3
      %p165 = pnand %p163, %p164
      %p166 = pneg %p165
      // Predicated region
      $region9: #{tpu_custom_call.1} parent=5 // pred_check
        _
      $region10: #{tpu_custom_call.1} parent=5 // pred_check_branch
        %168 = sbr.rel (%p165) target = $region12
      $region11: #{tpu_custom_call.1} parent=5 // pred_region
        %s169 = ssub.s32 %s19, 1
        // Predicated region
        $region13: #{tpu_custom_call.1} parent=11 // pred_check
          %p170 = pneg %p66
        $region14: #{tpu_custom_call.1} parent=11 // pred_check_branch
          %172 = sbr.rel (%p170) target = $region16
        $region15: #{tpu_custom_call.1} parent=11 // pred_region
          %174 = vsyncadd [#allocation7], 0
          %s175 = sshll.u32 %s1, 4
          %s176 = int_to_ptr.hbm [resolvable:$true] %s175
          %s177 = sshll.u32 [#allocation6], 4
          %s178 = int_to_ptr.vmem [resolvable:$true] %s177
          %183 = dma.hbm_to_vmem [thread:$0]  %s176, 2048, %s178, [#allocation7], 128, 128, 8
        $region16: #{tpu_custom_call.1} parent=11 // pred_fallthru
          _
        // Predicated region
        $region17: #{tpu_custom_call.1} parent=11 // pred_check
          %p184 = pneg %p87
        $region18: #{tpu_custom_call.1} parent=11 // pred_check_branch
          %186 = sbr.rel (%p184) target = $region20
        $region19: #{tpu_custom_call.1} parent=11 // pred_region
          %188 = vsyncadd [#allocation7], 0
          %s189 = sshll.u32 %s2, 4
          %s190 = int_to_ptr.hbm [resolvable:$true] %s189
          %s191 = sshll.u32 [#allocation8], 4
          %s192 = int_to_ptr.vmem [resolvable:$true] %s191
          %197 = dma.hbm_to_vmem [thread:$0]  %s190, 256, %s192, [#allocation7], 128, 128, 8
        $region20: #{tpu_custom_call.1} parent=11 // pred_fallthru
          _
        // Predicated region
        $region21: #{tpu_custom_call.1} parent=11 // pred_check
          %p198 = pneg %p108
        $region22: #{tpu_custom_call.1} parent=11 // pred_check_branch
          %200 = sbr.rel (%p198) target = $region24
        $region23: #{tpu_custom_call.1} parent=11 // pred_region
          %202 = vsyncadd [#allocation10], 0
          %s203 = sshll.u32 %s3, 4
          %s204 = int_to_ptr.hbm [resolvable:$true] %s203
          %s205 = sshll.u32 [#allocation9], 4
          %s206 = int_to_ptr.vmem [resolvable:$true] %s205
          %211 = dma.hbm_to_vmem [thread:$0]  %s204, 2048, %s206, [#allocation10], 128, 128, 8
        $region24: #{tpu_custom_call.1} parent=11 // pred_fallthru
          _
        // Predicated region
        $region25: #{tpu_custom_call.1} parent=11 // pred_check
          %p212 = pneg %p129
        $region26: #{tpu_custom_call.1} parent=11 // pred_check_branch
          %214 = sbr.rel (%p212) target = $region28
        $region27: #{tpu_custom_call.1} parent=11 // pred_region
          %216 = vsyncadd [#allocation10], 0
          %s218 = sshll.u32 %s4, 4
          %s219 = int_to_ptr.hbm [resolvable:$true] %s218
          %s220 = sshll.u32 [#allocation11], 4
          %s221 = int_to_ptr.vmem [resolvable:$true] %s220
          %223 = dma.hbm_to_vmem [thread:$0]  %s219, 64, %s221, [#allocation10]
        $region28: #{tpu_custom_call.1} parent=11 // pred_fallthru
          _
      $region12: #{tpu_custom_call.1} parent=5 // pred_fallthru
        _
      %p224 = scmp.lt.s32.totalorder %s19, 2
      // Predicated region
      $region29: #{tpu_custom_call.1} parent=5 // pred_check
        %p225 = pneg %p224
      $region30: #{tpu_custom_call.1} parent=5 // pred_check_branch
        %227 = sbr.rel (%p225) target = $region32
      $region31: #{tpu_custom_call.1} parent=5 // pred_region
        // Predicated region
        $region33: #{tpu_custom_call.1} parent=31 // pred_check
          %p228 = pneg %p39
        $region34: #{tpu_custom_call.1} parent=31 // pred_check_branch
          %230 = sbr.rel (%p228) target = $region36
        $region35: #{tpu_custom_call.1} parent=31 // pred_region
          %s231 = sand.u32 %s29, 1
          %s232 = scalar_lea.sflag [#allocation4], %s231
          %s233 = sand.u32 %s29, 1
          %s234 = smul.addr %s233, 256
          %s235 = scalar_lea.vmem [#allocation3], %s234
          %237 = vsyncadd %s232, 0
          %s238 = smul.addr %s19, 32
          %s239 = smul.addr %s238, 8
          %s240 = scalar_lea.hbm %s0, %s239
          %s241 = sshll.u32 %s240, 4
          %s242 = int_to_ptr.hbm [resolvable:$true] %s241
          %s243 = sshll.u32 %s235, 4
          %s244 = int_to_ptr.vmem [resolvable:$true] %s243
          %249 = dma.hbm_to_vmem [thread:$0]  %s242, 4096, %s244, %s232, 128, 128, 8
        $region36: #{tpu_custom_call.1} parent=31 // pred_fallthru
          _
      $region32: #{tpu_custom_call.1} parent=5 // pred_fallthru
        _
      %p250 = scmp.le.s32.totalorder 1, %s19
      %p251 = scmp.lt.s32.totalorder %s19, 3
      %p252 = pnand %p250, %p251
      %p253 = pneg %p252
      // Predicated region
      $region37: #{tpu_custom_call.1} parent=5 // pred_check
        _
      $region38: #{tpu_custom_call.1} parent=5 // pred_check_branch
        %255 = sbr.rel (%p252) target = $region40
      $region39: #{tpu_custom_call.1} parent=5 // pred_region
        %s256 = ssub.s32 %s19, 1
        %s257 = sand.u32 %s32, 1
        %s258 = scalar_lea.sflag [#allocation4], %s257
        %s259 = sand.u32 %s32, 1
        %s260 = smul.addr %s259, 256
        %s261 = scalar_lea.vmem [#allocation3], %s260
        // Predicated region
        $region41: #{tpu_custom_call.1} parent=39 // pred_check
          %p262 = pneg %p45
        $region42: #{tpu_custom_call.1} parent=39 // pred_check_branch
          %264 = sbr.rel (%p262) target = $region44
        $region43: #{tpu_custom_call.1} parent=39 // pred_region
          %266 = dma.done %s258, 4096
        $region44: #{tpu_custom_call.1} parent=39 // pred_fallthru
          _
        // Predicated region
        $region45: #{tpu_custom_call.1} parent=39 // pred_check
          %p267 = pneg %p66
        $region46: #{tpu_custom_call.1} parent=39 // pred_check_branch
          %269 = sbr.rel (%p267) target = $region48
        $region47: #{tpu_custom_call.1} parent=39 // pred_region
          %271 = dma.done [#allocation7], 2048
        $region48: #{tpu_custom_call.1} parent=39 // pred_fallthru
          _
        // Predicated region
        $region49: #{tpu_custom_call.1} parent=39 // pred_check
          %p272 = pneg %p87
        $region50: #{tpu_custom_call.1} parent=39 // pred_check_branch
          %274 = sbr.rel (%p272) target = $region52
        $region51: #{tpu_custom_call.1} parent=39 // pred_region
          %276 = dma.done [#allocation7], 256
        $region52: #{tpu_custom_call.1} parent=39 // pred_fallthru
          _
        // Predicated region
        $region53: #{tpu_custom_call.1} parent=39 // pred_check
          %p277 = pneg %p108
        $region54: #{tpu_custom_call.1} parent=39 // pred_check_branch
          %279 = sbr.rel (%p277) target = $region56
        $region55: #{tpu_custom_call.1} parent=39 // pred_region
          %281 = dma.done [#allocation10], 2048
        $region56: #{tpu_custom_call.1} parent=39 // pred_fallthru
          _
        // Predicated region
        $region57: #{tpu_custom_call.1} parent=39 // pred_check
          %p282 = pneg %p129
        $region58: #{tpu_custom_call.1} parent=39 // pred_check_branch
          %284 = sbr.rel (%p282) target = $region60
        $region59: #{tpu_custom_call.1} parent=39 // pred_region
          %286 = dma.done [#allocation10], 64
        $region60: #{tpu_custom_call.1} parent=39 // pred_fallthru
          _
        %s287 = sand.u32 %s32, 1
        %s288 = scalar_lea.sflag [#allocation4], %s287
        %s289 = sand.u32 %s32, 1
        %s290 = smul.addr %s289, 256
        %s291 = scalar_lea.vmem [#allocation3], %s290
        %p292 = pneg %p45
        %p293 = pneg %p42
        %p294 = pneg %p66
        %p295 = pneg %p63
        %p296 = pneg %p87
        %p297 = pneg %p84
        %p298 = pneg %p108
        %p299 = pneg %p105
        %p300 = pneg %p129
        %p301 = pneg %p126
        %p302 = pneg %p155
        %p303 = pneg %p152
        %s304 = sand.u32 %s142, 1
        %s305 = scalar_lea.sflag [#allocation5], %s304
        %s306 = sand.u32 %s142, 1
        %s307 = smul.addr %s306, 256
        %s308 = scalar_lea.vmem [#allocation12], %s307
        %v309 = vld [vmem:[%s261] sm:$0xff]
        %v310 = vld [vmem:[%s261 + $0x8] sm:$0xff]
        %v311 = vld [vmem:[%s261 + $0x10] sm:$0xff]
        %v312 = vld [vmem:[%s261 + $0x18] sm:$0xff]
        %v313 = vld [vmem:[%s261 + $0x20] sm:$0xff]
        %v314 = vld [vmem:[%s261 + $0x28] sm:$0xff]
        %v315 = vld [vmem:[%s261 + $0x30] sm:$0xff]
        %v316 = vld [vmem:[%s261 + $0x38] sm:$0xff]
        %v317 = vld [vmem:[%s261 + $0x40] sm:$0xff]
        %v318 = vld [vmem:[%s261 + $0x48] sm:$0xff]
        %v319 = vld [vmem:[%s261 + $0x50] sm:$0xff]
        %v320 = vld [vmem:[%s261 + $0x58] sm:$0xff]
        %v321 = vld [vmem:[%s261 + $0x60] sm:$0xff]
        %v322 = vld [vmem:[%s261 + $0x68] sm:$0xff]
        %v323 = vld [vmem:[%s261 + $0x70] sm:$0xff]
        %v324 = vld [vmem:[%s261 + $0x78] sm:$0xff]
        %v325 = vld [vmem:[%s261 + $0x80] sm:$0xff]
        %v326 = vld [vmem:[%s261 + $0x88] sm:$0xff]
        %v327 = vld [vmem:[%s261 + $0x90] sm:$0xff]
        %v328 = vld [vmem:[%s261 + $0x98] sm:$0xff]
        %v329 = vld [vmem:[%s261 + $0xa0] sm:$0xff]
        %v330 = vld [vmem:[%s261 + $0xa8] sm:$0xff]
        %v331 = vld [vmem:[%s261 + $0xb0] sm:$0xff]
        %v332 = vld [vmem:[%s261 + $0xb8] sm:$0xff]
        %v333 = vld [vmem:[%s261 + $0xc0] sm:$0xff]
        %v334 = vld [vmem:[%s261 + $0xc8] sm:$0xff]
        %v335 = vld [vmem:[%s261 + $0xd0] sm:$0xff]
        %v336 = vld [vmem:[%s261 + $0xd8] sm:$0xff]
        %v337 = vld [vmem:[%s261 + $0xe0] sm:$0xff]
        %v338 = vld [vmem:[%s261 + $0xe8] sm:$0xff]
        %v339 = vld [vmem:[%s261 + $0xf0] sm:$0xff]
        %v340 = vld [vmem:[%s261 + $0xf8] sm:$0xff]
        %v341 = vld [vmem:[#allocation11] sm:$0x7]
        %v342 = vld [vmem:[#allocation6] sm:$0xff]
        %v343 = vld [vmem:[#allocation6 + $0x8] sm:$0xff]
        %v344 = vld [vmem:[#allocation6 + $0x10] sm:$0xff]
        %v345 = vld [vmem:[#allocation6 + $0x18] sm:$0xff]
        %v346 = vld [vmem:[#allocation6 + $0x20] sm:$0xff]
        %v347 = vld [vmem:[#allocation6 + $0x28] sm:$0xff]
        %v348 = vld [vmem:[#allocation6 + $0x30] sm:$0xff]
        %v349 = vld [vmem:[#allocation6 + $0x38] sm:$0xff]
        %v350 = vld [vmem:[#allocation6 + $0x40] sm:$0xff]
        %v351 = vld [vmem:[#allocation6 + $0x48] sm:$0xff]
        %v352 = vld [vmem:[#allocation6 + $0x50] sm:$0xff]
        %v353 = vld [vmem:[#allocation6 + $0x58] sm:$0xff]
        %v354 = vld [vmem:[#allocation6 + $0x60] sm:$0xff]
        %v355 = vld [vmem:[#allocation6 + $0x68] sm:$0xff]
        %v356 = vld [vmem:[#allocation6 + $0x70] sm:$0xff]
        %v357 = vld [vmem:[#allocation6 + $0x78] sm:$0xff]
        %v358 = vperm.slane %v341, 0
        %359 = vmatpush.msra.mxu0 %v357
        %360 = vmatpush.msra.mxu0 %v356
        %361 = vmatpush.msra.mxu0 %v355
        %362 = vmatpush.msra.mxu0 %v354
        %363 = vmatpush.msra.mxu0 %v353
        %364 = vmatpush.msra.mxu0 %v352
        %365 = vmatpush.msra.mxu0 %v351
        %366 = vmatpush.msra.mxu0 %v350
        %367 = vmatpush.msra.mxu0 %v349
        %368 = vmatpush.msra.mxu0 %v348
        %369 = vmatpush.msra.mxu0 %v347
        %370 = vmatpush.msra.mxu0 %v346
        %371 = vmatpush.msra.mxu0 %v345
        %372 = vmatpush.msra.mxu0 %v344
        %373 = vmatpush.msra.mxu0 %v343
        %374 = vmatpush.msra.mxu0 %v342
        %375 = vmatmul.f32.gmra.mxu0 %v309
        %v376 = vpop.f32.mrf.mxu0
        %v377 = vadd.f32 %v358, %v376
        %378 = vmatmul.f32.gmra.mxu0 %v310
        %v379 = vpop.f32.mrf.mxu0
        %v380 = vadd.f32 %v358, %v379
        %381 = vmatmul.f32.gmra.mxu0 %v311
        %v382 = vpop.f32.mrf.mxu0
        %v383 = vadd.f32 %v358, %v382
        %384 = vmatmul.f32.gmra.mxu0 %v312
        %v385 = vpop.f32.mrf.mxu0
        %v386 = vadd.f32 %v358, %v385
        %387 = vmatmul.f32.gmra.mxu0 %v313
        %v388 = vpop.f32.mrf.mxu0
        %v389 = vadd.f32 %v358, %v388
        %390 = vmatmul.f32.gmra.mxu0 %v314
        %v391 = vpop.f32.mrf.mxu0
        %v392 = vadd.f32 %v358, %v391
        %393 = vmatmul.f32.gmra.mxu0 %v315
        %v394 = vpop.f32.mrf.mxu0
        %v395 = vadd.f32 %v358, %v394
        %396 = vmatmul.f32.gmra.mxu0 %v316
        %v397 = vpop.f32.mrf.mxu0
        %v398 = vadd.f32 %v358, %v397
        %399 = vmatmul.f32.gmra.mxu0 %v317
        %v400 = vpop.f32.mrf.mxu0
        %v401 = vadd.f32 %v358, %v400
        %402 = vmatmul.f32.gmra.mxu0 %v318
        %v403 = vpop.f32.mrf.mxu0
        %v404 = vadd.f32 %v358, %v403
        %405 = vmatmul.f32.gmra.mxu0 %v319
        %v406 = vpop.f32.mrf.mxu0
        %v407 = vadd.f32 %v358, %v406
        %408 = vmatmul.f32.gmra.mxu0 %v320
        %v409 = vpop.f32.mrf.mxu0
        %v410 = vadd.f32 %v358, %v409
        %411 = vmatmul.f32.gmra.mxu0 %v321
        %v412 = vpop.f32.mrf.mxu0
        %v413 = vadd.f32 %v358, %v412
        %414 = vmatmul.f32.gmra.mxu0 %v322
        %v415 = vpop.f32.mrf.mxu0
        %v416 = vadd.f32 %v358, %v415
        %417 = vmatmul.f32.gmra.mxu0 %v323
        %v418 = vpop.f32.mrf.mxu0
        %v419 = vadd.f32 %v358, %v418
        %420 = vmatmul.f32.gmra.mxu0 %v324
        %v421 = vpop.f32.mrf.mxu0
        %v422 = vadd.f32 %v358, %v421
        %423 = vmatmul.f32.gmra.mxu0 %v325
        %v424 = vpop.f32.mrf.mxu0
        %v425 = vadd.f32 %v358, %v424
        %426 = vmatmul.f32.gmra.mxu0 %v326
        %v427 = vpop.f32.mrf.mxu0
        %v428 = vadd.f32 %v358, %v427
        %429 = vmatmul.f32.gmra.mxu0 %v327
        %v430 = vpop.f32.mrf.mxu0
        %v431 = vadd.f32 %v358, %v430
        %432 = vmatmul.f32.gmra.mxu0 %v328
        %v433 = vpop.f32.mrf.mxu0
        %v434 = vadd.f32 %v358, %v433
        %435 = vmatmul.f32.gmra.mxu0 %v329
        %v436 = vpop.f32.mrf.mxu0
        %v437 = vadd.f32 %v358, %v436
        %438 = vmatmul.f32.gmra.mxu0 %v330
        %v439 = vpop.f32.mrf.mxu0
        %v440 = vadd.f32 %v358, %v439
        %441 = vmatmul.f32.gmra.mxu0 %v331
        %v442 = vpop.f32.mrf.mxu0
        %v443 = vadd.f32 %v358, %v442
        %444 = vmatmul.f32.gmra.mxu0 %v332
        %v445 = vpop.f32.mrf.mxu0
        %v446 = vadd.f32 %v358, %v445
        %447 = vmatmul.f32.gmra.mxu0 %v333
        %v448 = vpop.f32.mrf.mxu0
        %v449 = vadd.f32 %v358, %v448
        %450 = vmatmul.f32.gmra.mxu0 %v334
        %v451 = vpop.f32.mrf.mxu0
        %v452 = vadd.f32 %v358, %v451
        %453 = vmatmul.f32.gmra.mxu0 %v335
        %v454 = vpop.f32.mrf.mxu0
        %v455 = vadd.f32 %v358, %v454
        %456 = vmatmul.f32.gmra.mxu0 %v336
        %v457 = vpop.f32.mrf.mxu0
        %v458 = vadd.f32 %v358, %v457
        %459 = vmatmul.f32.gmra.mxu0 %v337
        %v460 = vpop.f32.mrf.mxu0
        %v461 = vadd.f32 %v358, %v460
        %462 = vmatmul.f32.gmra.mxu0 %v338
        %v463 = vpop.f32.mrf.mxu0
        %v464 = vadd.f32 %v358, %v463
        %465 = vmatmul.f32.gmra.mxu0 %v339
        %v466 = vpop.f32.mrf.mxu0
        %v467 = vadd.f32 %v358, %v466
        %468 = vmatmul.f32.gmra.mxu0 %v340
        %v469 = vpop.f32.mrf.mxu0
        %v470 = vadd.f32 %v358, %v469
        %471 = vdwg.mxu0
        %v472 = vmax.f32 %v377, 0.0
        %v473 = vmax.f32 %v380, 0.0
        %v474 = vmax.f32 %v383, 0.0
        %v475 = vmax.f32 %v386, 0.0
        %v476 = vmax.f32 %v389, 0.0
        %v477 = vmax.f32 %v392, 0.0
        %v478 = vmax.f32 %v395, 0.0
        %v479 = vmax.f32 %v398, 0.0
        %v480 = vmax.f32 %v401, 0.0
        %v481 = vmax.f32 %v404, 0.0
        %v482 = vmax.f32 %v407, 0.0
        %v483 = vmax.f32 %v410, 0.0
        %v484 = vmax.f32 %v413, 0.0
        %v485 = vmax.f32 %v416, 0.0
        %v486 = vmax.f32 %v419, 0.0
        %v487 = vmax.f32 %v422, 0.0
        %v488 = vmax.f32 %v425, 0.0
        %v489 = vmax.f32 %v428, 0.0
        %v490 = vmax.f32 %v431, 0.0
        %v491 = vmax.f32 %v434, 0.0
        %v492 = vmax.f32 %v437, 0.0
        %v493 = vmax.f32 %v440, 0.0
        %v494 = vmax.f32 %v443, 0.0
        %v495 = vmax.f32 %v446, 0.0
        %v496 = vmax.f32 %v449, 0.0
        %v497 = vmax.f32 %v452, 0.0
        %v498 = vmax.f32 %v455, 0.0
        %v499 = vmax.f32 %v458, 0.0
        %v500 = vmax.f32 %v461, 0.0
        %v501 = vmax.f32 %v464, 0.0
        %v502 = vmax.f32 %v467, 0.0
        %v503 = vmax.f32 %v470, 0.0
        %504 = vst [vmem:[#allocation2] sm:$0xff] 0.0
        %505 = vst [vmem:[#allocation2 + $0x8] sm:$0xff] 0.0
        %506 = vst [vmem:[#allocation2 + $0x10] sm:$0x3] 0.0
        %507 = vst [vmem:[#allocation2 + $0x18] sm:$0xff] 0.0
        %508 = vst [vmem:[#allocation2 + $0x20] sm:$0xff] 0.0
        %509 = vst [vmem:[#allocation2 + $0x28] sm:$0x3] 0.0
        %510 = vst [vmem:[#allocation2 + $0x30] sm:$0xff] 0.0
        %511 = vst [vmem:[#allocation2 + $0x38] sm:$0xff] 0.0
        %512 = vst [vmem:[#allocation2 + $0x40] sm:$0x3] 0.0
        %513 = vst [vmem:[#allocation2 + $0x48] sm:$0xff] 0.0
        %514 = vst [vmem:[#allocation2 + $0x50] sm:$0xff] 0.0
        %515 = vst [vmem:[#allocation2 + $0x58] sm:$0x3] 0.0
        %516 = vst [vmem:[#allocation2 + $0x60] sm:$0xff] 0.0
        %517 = vst [vmem:[#allocation2 + $0x68] sm:$0xff] 0.0
        %518 = vst [vmem:[#allocation2 + $0x70] sm:$0x3] 0.0
        %519 = vst [vmem:[#allocation2 + $0x78] sm:$0xff] 0.0
        %520 = vst [vmem:[#allocation2 + $0x80] sm:$0xff] 0.0
        %521 = vst [vmem:[#allocation2 + $0x88] sm:$0x3] 0.0
        %522 = vst [vmem:[#allocation2 + $0x90] sm:$0xff] 0.0
        %523 = vst [vmem:[#allocation2 + $0x98] sm:$0xff] 0.0
        %524 = vst [vmem:[#allocation2 + $0xa0] sm:$0x3] 0.0
        %525 = vst [vmem:[#allocation2 + $0xa8] sm:$0xff] 0.0
        %526 = vst [vmem:[#allocation2 + $0xb0] sm:$0xff] 0.0
        %527 = vst [vmem:[#allocation2 + $0xb8] sm:$0x3] 0.0
        %528 = vst [vmem:[#allocation2 + $0xc0] sm:$0xff] 0.0
        %529 = vst [vmem:[#allocation2 + $0xc8] sm:$0xff] 0.0
        %530 = vst [vmem:[#allocation2 + $0xd0] sm:$0x3] 0.0
        %531 = vst [vmem:[#allocation2 + $0xd8] sm:$0xff] 0.0
        %532 = vst [vmem:[#allocation2 + $0xe0] sm:$0xff] 0.0
        %533 = vst [vmem:[#allocation2 + $0xe8] sm:$0x3] 0.0
        %534 = vst [vmem:[#allocation2 + $0xf0] sm:$0xff] 0.0
        %535 = vst [vmem:[#allocation2 + $0xf8] sm:$0xff] 0.0
        %536 = vst [vmem:[#allocation2 + $0x100] sm:$0x3] 0.0
        %537 = vst [vmem:[#allocation2 + $0x108] sm:$0xff] 0.0
        %538 = vst [vmem:[#allocation2 + $0x110] sm:$0xff] 0.0
        %539 = vst [vmem:[#allocation2 + $0x118] sm:$0x3] 0.0
        %540 = vst [vmem:[#allocation2 + $0x120] sm:$0xff] 0.0
        %541 = vst [vmem:[#allocation2 + $0x128] sm:$0xff] 0.0
        %542 = vst [vmem:[#allocation2 + $0x130] sm:$0x3] 0.0
        %543 = vst [vmem:[#allocation2 + $0x138] sm:$0xff] 0.0
        %544 = vst [vmem:[#allocation2 + $0x140] sm:$0xff] 0.0
        %545 = vst [vmem:[#allocation2 + $0x148] sm:$0x3] 0.0
        %546 = vst [vmem:[#allocation2 + $0x150] sm:$0xff] 0.0
        %547 = vst [vmem:[#allocation2 + $0x158] sm:$0xff] 0.0
        %548 = vst [vmem:[#allocation2 + $0x160] sm:$0x3] 0.0
        %549 = vst [vmem:[#allocation2 + $0x168] sm:$0xff] 0.0
        %550 = vst [vmem:[#allocation2 + $0x170] sm:$0xff] 0.0
        %551 = vst [vmem:[#allocation2 + $0x178] sm:$0x3] 0.0
        %552 = vst [vmem:[#allocation2 + $0x180] sm:$0xff] 0.0
        %553 = vst [vmem:[#allocation2 + $0x188] sm:$0xff] 0.0
        %554 = vst [vmem:[#allocation2 + $0x190] sm:$0x3] 0.0
        %555 = vst [vmem:[#allocation2 + $0x198] sm:$0xff] 0.0
        %556 = vst [vmem:[#allocation2 + $0x1a0] sm:$0xff] 0.0
        %557 = vst [vmem:[#allocation2 + $0x1a8] sm:$0x3] 0.0
        %s558 = scalar_lea.vmem [#allocation2], 24
        %559 = vst [vmem:[%s558 + $0x1] sm:$0xff] %v472
        %560 = vst [vmem:[%s558 + $0x9] sm:$0xff] %v473
        %561 = vst [vmem:[%s558 + $0x19] sm:$0xff] %v474
        %562 = vst [vmem:[%s558 + $0x21] sm:$0xff] %v475
        %563 = vst [vmem:[%s558 + $0x31] sm:$0xff] %v476
        %564 = vst [vmem:[%s558 + $0x39] sm:$0xff] %v477
        %565 = vst [vmem:[%s558 + $0x49] sm:$0xff] %v478
        %566 = vst [vmem:[%s558 + $0x51] sm:$0xff] %v479
        %567 = vst [vmem:[%s558 + $0x61] sm:$0xff] %v480
        %568 = vst [vmem:[%s558 + $0x69] sm:$0xff] %v481
        %569 = vst [vmem:[%s558 + $0x79] sm:$0xff] %v482
        %570 = vst [vmem:[%s558 + $0x81] sm:$0xff] %v483
        %571 = vst [vmem:[%s558 + $0x91] sm:$0xff] %v484
        %572 = vst [vmem:[%s558 + $0x99] sm:$0xff] %v485
        %573 = vst [vmem:[%s558 + $0xa9] sm:$0xff] %v486
        %574 = vst [vmem:[%s558 + $0xb1] sm:$0xff] %v487
        %575 = vst [vmem:[%s558 + $0xc1] sm:$0xff] %v488
        %576 = vst [vmem:[%s558 + $0xc9] sm:$0xff] %v489
        %577 = vst [vmem:[%s558 + $0xd9] sm:$0xff] %v490
        %578 = vst [vmem:[%s558 + $0xe1] sm:$0xff] %v491
        %579 = vst [vmem:[%s558 + $0xf1] sm:$0xff] %v492
        %580 = vst [vmem:[%s558 + $0xf9] sm:$0xff] %v493
        %581 = vst [vmem:[%s558 + $0x109] sm:$0xff] %v494
        %582 = vst [vmem:[%s558 + $0x111] sm:$0xff] %v495
        %583 = vst [vmem:[%s558 + $0x121] sm:$0xff] %v496
        %584 = vst [vmem:[%s558 + $0x129] sm:$0xff] %v497
        %585 = vst [vmem:[%s558 + $0x139] sm:$0xff] %v498
        %586 = vst [vmem:[%s558 + $0x141] sm:$0xff] %v499
        %587 = vst [vmem:[%s558 + $0x151] sm:$0xff] %v500
        %588 = vst [vmem:[%s558 + $0x159] sm:$0xff] %v501
        %589 = vst [vmem:[%s558 + $0x169] sm:$0xff] %v502
        %590 = vst [vmem:[%s558 + $0x171] sm:$0xff] %v503
        %v591 = vld [vmem:[#allocation8] sm:$0xff]
        %v592 = vld [vmem:[#allocation8 + $0x8] sm:$0x1]
        %v593 = vld [vmem:[#allocation2] sm:$0xff]
        %v594 = vld [vmem:[#allocation2 + $0x8] sm:$0xff]
        %v595 = vld [vmem:[#allocation2 + $0x18] sm:$0xff]
        %v596 = vld [vmem:[#allocation2 + $0x20] sm:$0xff]
        %v597 = vld [vmem:[#allocation2 + $0x30] sm:$0xff]
        %v598 = vld [vmem:[#allocation2 + $0x38] sm:$0xff]
        %v599 = vld [vmem:[#allocation2 + $0x48] sm:$0xff]
        %v600 = vld [vmem:[#allocation2 + $0x50] sm:$0xff]
        %v601 = vld [vmem:[#allocation2 + $0x60] sm:$0xff]
        %v602 = vld [vmem:[#allocation2 + $0x68] sm:$0xff]
        %v603 = vld [vmem:[#allocation2 + $0x78] sm:$0xff]
        %v604 = vld [vmem:[#allocation2 + $0x80] sm:$0xff]
        %v605 = vld [vmem:[#allocation2 + $0x90] sm:$0xff]
        %v606 = vld [vmem:[#allocation2 + $0x98] sm:$0xff]
        %v607 = vld [vmem:[#allocation2 + $0xa8] sm:$0xff]
        %v608 = vld [vmem:[#allocation2 + $0xb0] sm:$0xff]
        %v609 = vld [vmem:[#allocation2 + $0xc0] sm:$0xff]
        %v610 = vld [vmem:[#allocation2 + $0xc8] sm:$0xff]
        %v611 = vld [vmem:[#allocation2 + $0xd8] sm:$0xff]
        %v612 = vld [vmem:[#allocation2 + $0xe0] sm:$0xff]
        %v613 = vld [vmem:[#allocation2 + $0xf0] sm:$0xff]
        %v614 = vld [vmem:[#allocation2 + $0xf8] sm:$0xff]
        %v615 = vld [vmem:[#allocation2 + $0x108] sm:$0xff]
        %v616 = vld [vmem:[#allocation2 + $0x110] sm:$0xff]
        %v617 = vld [vmem:[#allocation2 + $0x120] sm:$0xff]
        %v618 = vld [vmem:[#allocation2 + $0x128] sm:$0xff]
        %v619 = vld [vmem:[#allocation2 + $0x138] sm:$0xff]
        %v620 = vld [vmem:[#allocation2 + $0x140] sm:$0xff]
        %v621 = vld [vmem:[#allocation2 + $0x150] sm:$0xff]
        %v622 = vld [vmem:[#allocation2 + $0x158] sm:$0xff]
        %v623 = vld [vmem:[#allocation2 + $0x168] sm:$0xff]
        %v624 = vld [vmem:[#allocation2 + $0x170] sm:$0xff]
        %v625 = vperm.slane %v591, 0
        %v626 = vmul.f32 %v593, %v625
        %v627 = vmul.f32 %v594, %v625
        %v628 = vmul.f32 %v595, %v625
        %v629 = vmul.f32 %v596, %v625
        %v630 = vmul.f32 %v597, %v625
        %v631 = vmul.f32 %v598, %v625
        %v632 = vmul.f32 %v599, %v625
        %v633 = vmul.f32 %v600, %v625
        %v634 = vmul.f32 %v601, %v625
        %v635 = vmul.f32 %v602, %v625
        %v636 = vmul.f32 %v603, %v625
        %v637 = vmul.f32 %v604, %v625
        %v638 = vmul.f32 %v605, %v625
        %v639 = vmul.f32 %v606, %v625
        %v640 = vmul.f32 %v607, %v625
        %v641 = vmul.f32 %v608, %v625
        %v642 = vmul.f32 %v609, %v625
        %v643 = vmul.f32 %v610, %v625
        %v644 = vmul.f32 %v611, %v625
        %v645 = vmul.f32 %v612, %v625
        %v646 = vmul.f32 %v613, %v625
        %v647 = vmul.f32 %v614, %v625
        %v648 = vmul.f32 %v615, %v625
        %v649 = vmul.f32 %v616, %v625
        %v650 = vmul.f32 %v617, %v625
        %v651 = vmul.f32 %v618, %v625
        %v652 = vmul.f32 %v619, %v625
        %v653 = vmul.f32 %v620, %v625
        %v654 = vmul.f32 %v621, %v625
        %v655 = vmul.f32 %v622, %v625
        %v656 = vmul.f32 %v623, %v625
        %v657 = vmul.f32 %v624, %v625
        %v658 = vld [vmem:[#allocation2 + $0x1] sm:$0xff]
        %v659 = vld [vmem:[#allocation2 + $0x9] sm:$0xff]
        %v660 = vld [vmem:[#allocation2 + $0x19] sm:$0xff]
        %v661 = vld [vmem:[#allocation2 + $0x21] sm:$0xff]
        %v662 = vld [vmem:[#allocation2 + $0x31] sm:$0xff]
        %v663 = vld [vmem:[#allocation2 + $0x39] sm:$0xff]
        %v664 = vld [vmem:[#allocation2 + $0x49] sm:$0xff]
        %v665 = vld [vmem:[#allocation2 + $0x51] sm:$0xff]
        %v666 = vld [vmem:[#allocation2 + $0x61] sm:$0xff]
        %v667 = vld [vmem:[#allocation2 + $0x69] sm:$0xff]
        %v668 = vld [vmem:[#allocation2 + $0x79] sm:$0xff]
        %v669 = vld [vmem:[#allocation2 + $0x81] sm:$0xff]
        %v670 = vld [vmem:[#allocation2 + $0x91] sm:$0xff]
        %v671 = vld [vmem:[#allocation2 + $0x99] sm:$0xff]
        %v672 = vld [vmem:[#allocation2 + $0xa9] sm:$0xff]
        %v673 = vld [vmem:[#allocation2 + $0xb1] sm:$0xff]
        %v674 = vld [vmem:[#allocation2 + $0xc1] sm:$0xff]
        %v675 = vld [vmem:[#allocation2 + $0xc9] sm:$0xff]
        %v676 = vld [vmem:[#allocation2 + $0xd9] sm:$0xff]
        %v677 = vld [vmem:[#allocation2 + $0xe1] sm:$0xff]
        %v678 = vld [vmem:[#allocation2 + $0xf1] sm:$0xff]
        %v679 = vld [vmem:[#allocation2 + $0xf9] sm:$0xff]
        %v680 = vld [vmem:[#allocation2 + $0x109] sm:$0xff]
        %v681 = vld [vmem:[#allocation2 + $0x111] sm:$0xff]
        %v682 = vld [vmem:[#allocation2 + $0x121] sm:$0xff]
        %v683 = vld [vmem:[#allocation2 + $0x129] sm:$0xff]
        %v684 = vld [vmem:[#allocation2 + $0x139] sm:$0xff]
        %v685 = vld [vmem:[#allocation2 + $0x141] sm:$0xff]
        %v686 = vld [vmem:[#allocation2 + $0x151] sm:$0xff]
        %v687 = vld [vmem:[#allocation2 + $0x159] sm:$0xff]
        %v688 = vld [vmem:[#allocation2 + $0x169] sm:$0xff]
        %v689 = vld [vmem:[#allocation2 + $0x171] sm:$0xff]
        %v690 = vperm.slane %v591, 1
        %v691 = vmul.f32 %v658, %v690
        %v692 = vmul.f32 %v659, %v690
        %v693 = vmul.f32 %v660, %v690
        %v694 = vmul.f32 %v661, %v690
        %v695 = vmul.f32 %v662, %v690
        %v696 = vmul.f32 %v663, %v690
        %v697 = vmul.f32 %v664, %v690
        %v698 = vmul.f32 %v665, %v690
        %v699 = vmul.f32 %v666, %v690
        %v700 = vmul.f32 %v667, %v690
        %v701 = vmul.f32 %v668, %v690
        %v702 = vmul.f32 %v669, %v690
        %v703 = vmul.f32 %v670, %v690
        %v704 = vmul.f32 %v671, %v690
        %v705 = vmul.f32 %v672, %v690
        %v706 = vmul.f32 %v673, %v690
        %v707 = vmul.f32 %v674, %v690
        %v708 = vmul.f32 %v675, %v690
        %v709 = vmul.f32 %v676, %v690
        %v710 = vmul.f32 %v677, %v690
        %v711 = vmul.f32 %v678, %v690
        %v712 = vmul.f32 %v679, %v690
        %v713 = vmul.f32 %v680, %v690
        %v714 = vmul.f32 %v681, %v690
        %v715 = vmul.f32 %v682, %v690
        %v716 = vmul.f32 %v683, %v690
        %v717 = vmul.f32 %v684, %v690
        %v718 = vmul.f32 %v685, %v690
        %v719 = vmul.f32 %v686, %v690
        %v720 = vmul.f32 %v687, %v690
        %v721 = vmul.f32 %v688, %v690
        %v722 = vmul.f32 %v689, %v690
        %v723 = vadd.f32 %v626, %v691
        %v724 = vadd.f32 %v627, %v692
        %v725 = vadd.f32 %v628, %v693
        %v726 = vadd.f32 %v629, %v694
        %v727 = vadd.f32 %v630, %v695
        %v728 = vadd.f32 %v631, %v696
        %v729 = vadd.f32 %v632, %v697
        %v730 = vadd.f32 %v633, %v698
        %v731 = vadd.f32 %v634, %v699
        %v732 = vadd.f32 %v635, %v700
        %v733 = vadd.f32 %v636, %v701
        %v734 = vadd.f32 %v637, %v702
        %v735 = vadd.f32 %v638, %v703
        %v736 = vadd.f32 %v639, %v704
        %v737 = vadd.f32 %v640, %v705
        %v738 = vadd.f32 %v641, %v706
        %v739 = vadd.f32 %v642, %v707
        %v740 = vadd.f32 %v643, %v708
        %v741 = vadd.f32 %v644, %v709
        %v742 = vadd.f32 %v645, %v710
        %v743 = vadd.f32 %v646, %v711
        %v744 = vadd.f32 %v647, %v712
        %v745 = vadd.f32 %v648, %v713
        %v746 = vadd.f32 %v649, %v714
        %v747 = vadd.f32 %v650, %v715
        %v748 = vadd.f32 %v651, %v716
        %v749 = vadd.f32 %v652, %v717
        %v750 = vadd.f32 %v653, %v718
        %v751 = vadd.f32 %v654, %v719
        %v752 = vadd.f32 %v655, %v720
        %v753 = vadd.f32 %v656, %v721
        %v754 = vadd.f32 %v657, %v722
        %v755 = vld [vmem:[#allocation2 + $0x2] sm:$0xff]
        %v756 = vld [vmem:[#allocation2 + $0xa] sm:$0xff]
        %v757 = vld [vmem:[#allocation2 + $0x1a] sm:$0xff]
        %v758 = vld [vmem:[#allocation2 + $0x22] sm:$0xff]
        %v759 = vld [vmem:[#allocation2 + $0x32] sm:$0xff]
        %v760 = vld [vmem:[#allocation2 + $0x3a] sm:$0xff]
        %v761 = vld [vmem:[#allocation2 + $0x4a] sm:$0xff]
        %v762 = vld [vmem:[#allocation2 + $0x52] sm:$0xff]
        %v763 = vld [vmem:[#allocation2 + $0x62] sm:$0xff]
        %v764 = vld [vmem:[#allocation2 + $0x6a] sm:$0xff]
        %v765 = vld [vmem:[#allocation2 + $0x7a] sm:$0xff]
        %v766 = vld [vmem:[#allocation2 + $0x82] sm:$0xff]
        %v767 = vld [vmem:[#allocation2 + $0x92] sm:$0xff]
        %v768 = vld [vmem:[#allocation2 + $0x9a] sm:$0xff]
        %v769 = vld [vmem:[#allocation2 + $0xaa] sm:$0xff]
        %v770 = vld [vmem:[#allocation2 + $0xb2] sm:$0xff]
        %v771 = vld [vmem:[#allocation2 + $0xc2] sm:$0xff]
        %v772 = vld [vmem:[#allocation2 + $0xca] sm:$0xff]
        %v773 = vld [vmem:[#allocation2 + $0xda] sm:$0xff]
        %v774 = vld [vmem:[#allocation2 + $0xe2] sm:$0xff]
        %v775 = vld [vmem:[#allocation2 + $0xf2] sm:$0xff]
        %v776 = vld [vmem:[#allocation2 + $0xfa] sm:$0xff]
        %v777 = vld [vmem:[#allocation2 + $0x10a] sm:$0xff]
        %v778 = vld [vmem:[#allocation2 + $0x112] sm:$0xff]
        %v779 = vld [vmem:[#allocation2 + $0x122] sm:$0xff]
        %v780 = vld [vmem:[#allocation2 + $0x12a] sm:$0xff]
        %v781 = vld [vmem:[#allocation2 + $0x13a] sm:$0xff]
        %v782 = vld [vmem:[#allocation2 + $0x142] sm:$0xff]
        %v783 = vld [vmem:[#allocation2 + $0x152] sm:$0xff]
        %v784 = vld [vmem:[#allocation2 + $0x15a] sm:$0xff]
        %v785 = vld [vmem:[#allocation2 + $0x16a] sm:$0xff]
        %v786 = vld [vmem:[#allocation2 + $0x172] sm:$0xff]
        %v787 = vperm.slane %v591, 2
        %v788 = vmul.f32 %v755, %v787
        %v789 = vmul.f32 %v756, %v787
        %v790 = vmul.f32 %v757, %v787
        %v791 = vmul.f32 %v758, %v787
        %v792 = vmul.f32 %v759, %v787
        %v793 = vmul.f32 %v760, %v787
        %v794 = vmul.f32 %v761, %v787
        %v795 = vmul.f32 %v762, %v787
        %v796 = vmul.f32 %v763, %v787
        %v797 = vmul.f32 %v764, %v787
        %v798 = vmul.f32 %v765, %v787
        %v799 = vmul.f32 %v766, %v787
        %v800 = vmul.f32 %v767, %v787
        %v801 = vmul.f32 %v768, %v787
        %v802 = vmul.f32 %v769, %v787
        %v803 = vmul.f32 %v770, %v787
        %v804 = vmul.f32 %v771, %v787
        %v805 = vmul.f32 %v772, %v787
        %v806 = vmul.f32 %v773, %v787
        %v807 = vmul.f32 %v774, %v787
        %v808 = vmul.f32 %v775, %v787
        %v809 = vmul.f32 %v776, %v787
        %v810 = vmul.f32 %v777, %v787
        %v811 = vmul.f32 %v778, %v787
        %v812 = vmul.f32 %v779, %v787
        %v813 = vmul.f32 %v780, %v787
        %v814 = vmul.f32 %v781, %v787
        %v815 = vmul.f32 %v782, %v787
        %v816 = vmul.f32 %v783, %v787
        %v817 = vmul.f32 %v784, %v787
        %v818 = vmul.f32 %v785, %v787
        %v819 = vmul.f32 %v786, %v787
        %v820 = vadd.f32 %v723, %v788
        %v821 = vadd.f32 %v724, %v789
        %v822 = vadd.f32 %v725, %v790
        %v823 = vadd.f32 %v726, %v791
        %v824 = vadd.f32 %v727, %v792
        %v825 = vadd.f32 %v728, %v793
        %v826 = vadd.f32 %v729, %v794
        %v827 = vadd.f32 %v730, %v795
        %v828 = vadd.f32 %v731, %v796
        %v829 = vadd.f32 %v732, %v797
        %v830 = vadd.f32 %v733, %v798
        %v831 = vadd.f32 %v734, %v799
        %v832 = vadd.f32 %v735, %v800
        %v833 = vadd.f32 %v736, %v801
        %v834 = vadd.f32 %v737, %v802
        %v835 = vadd.f32 %v738, %v803
        %v836 = vadd.f32 %v739, %v804
        %v837 = vadd.f32 %v740, %v805
        %v838 = vadd.f32 %v741, %v806
        %v839 = vadd.f32 %v742, %v807
        %v840 = vadd.f32 %v743, %v808
        %v841 = vadd.f32 %v744, %v809
        %v842 = vadd.f32 %v745, %v810
        %v843 = vadd.f32 %v746, %v811
        %v844 = vadd.f32 %v747, %v812
        %v845 = vadd.f32 %v748, %v813
        %v846 = vadd.f32 %v749, %v814
        %v847 = vadd.f32 %v750, %v815
        %v848 = vadd.f32 %v751, %v816
        %v849 = vadd.f32 %v752, %v817
        %v850 = vadd.f32 %v753, %v818
        %v851 = vadd.f32 %v754, %v819
        %v852 = vld [vmem:[%s558] sm:$0xff]
        %v853 = vld [vmem:[%s558 + $0x8] sm:$0xff]
        %v854 = vld [vmem:[%s558 + $0x18] sm:$0xff]
        %v855 = vld [vmem:[%s558 + $0x20] sm:$0xff]
        %v856 = vld [vmem:[%s558 + $0x30] sm:$0xff]
        %v857 = vld [vmem:[%s558 + $0x38] sm:$0xff]
        %v858 = vld [vmem:[%s558 + $0x48] sm:$0xff]
        %v859 = vld [vmem:[%s558 + $0x50] sm:$0xff]
        %v860 = vld [vmem:[%s558 + $0x60] sm:$0xff]
        %v861 = vld [vmem:[%s558 + $0x68] sm:$0xff]
        %v862 = vld [vmem:[%s558 + $0x78] sm:$0xff]
        %v863 = vld [vmem:[%s558 + $0x80] sm:$0xff]
        %v864 = vld [vmem:[%s558 + $0x90] sm:$0xff]
        %v865 = vld [vmem:[%s558 + $0x98] sm:$0xff]
        %v866 = vld [vmem:[%s558 + $0xa8] sm:$0xff]
        %v867 = vld [vmem:[%s558 + $0xb0] sm:$0xff]
        %v868 = vld [vmem:[%s558 + $0xc0] sm:$0xff]
        %v869 = vld [vmem:[%s558 + $0xc8] sm:$0xff]
        %v870 = vld [vmem:[%s558 + $0xd8] sm:$0xff]
        %v871 = vld [vmem:[%s558 + $0xe0] sm:$0xff]
        %v872 = vld [vmem:[%s558 + $0xf0] sm:$0xff]
        %v873 = vld [vmem:[%s558 + $0xf8] sm:$0xff]
        %v874 = vld [vmem:[%s558 + $0x108] sm:$0xff]
        %v875 = vld [vmem:[%s558 + $0x110] sm:$0xff]
        %v876 = vld [vmem:[%s558 + $0x120] sm:$0xff]
        %v877 = vld [vmem:[%s558 + $0x128] sm:$0xff]
        %v878 = vld [vmem:[%s558 + $0x138] sm:$0xff]
        %v879 = vld [vmem:[%s558 + $0x140] sm:$0xff]
        %v880 = vld [vmem:[%s558 + $0x150] sm:$0xff]
        %v881 = vld [vmem:[%s558 + $0x158] sm:$0xff]
        %v882 = vld [vmem:[%s558 + $0x168] sm:$0xff]
        %v883 = vld [vmem:[%s558 + $0x170] sm:$0xff]
        %v884 = vperm.slane %v591, 3
        %v885 = vmul.f32 %v852, %v884
        %v886 = vmul.f32 %v853, %v884
        %v887 = vmul.f32 %v854, %v884
        %v888 = vmul.f32 %v855, %v884
        %v889 = vmul.f32 %v856, %v884
        %v890 = vmul.f32 %v857, %v884
        %v891 = vmul.f32 %v858, %v884
        %v892 = vmul.f32 %v859, %v884
        %v893 = vmul.f32 %v860, %v884
        %v894 = vmul.f32 %v861, %v884
        %v895 = vmul.f32 %v862, %v884
        %v896 = vmul.f32 %v863, %v884
        %v897 = vmul.f32 %v864, %v884
        %v898 = vmul.f32 %v865, %v884
        %v899 = vmul.f32 %v866, %v884
        %v900 = vmul.f32 %v867, %v884
        %v901 = vmul.f32 %v868, %v884
        %v902 = vmul.f32 %v869, %v884
        %v903 = vmul.f32 %v870, %v884
        %v904 = vmul.f32 %v871, %v884
        %v905 = vmul.f32 %v872, %v884
        %v906 = vmul.f32 %v873, %v884
        %v907 = vmul.f32 %v874, %v884
        %v908 = vmul.f32 %v875, %v884
        %v909 = vmul.f32 %v876, %v884
        %v910 = vmul.f32 %v877, %v884
        %v911 = vmul.f32 %v878, %v884
        %v912 = vmul.f32 %v879, %v884
        %v913 = vmul.f32 %v880, %v884
        %v914 = vmul.f32 %v881, %v884
        %v915 = vmul.f32 %v882, %v884
        %v916 = vmul.f32 %v883, %v884
        %v917 = vadd.f32 %v820, %v885
        %v918 = vadd.f32 %v821, %v886
        %v919 = vadd.f32 %v822, %v887
        %v920 = vadd.f32 %v823, %v888
        %v921 = vadd.f32 %v824, %v889
        %v922 = vadd.f32 %v825, %v890
        %v923 = vadd.f32 %v826, %v891
        %v924 = vadd.f32 %v827, %v892
        %v925 = vadd.f32 %v828, %v893
        %v926 = vadd.f32 %v829, %v894
        %v927 = vadd.f32 %v830, %v895
        %v928 = vadd.f32 %v831, %v896
        %v929 = vadd.f32 %v832, %v897
        %v930 = vadd.f32 %v833, %v898
        %v931 = vadd.f32 %v834, %v899
        %v932 = vadd.f32 %v835, %v900
        %v933 = vadd.f32 %v836, %v901
        %v934 = vadd.f32 %v837, %v902
        %v935 = vadd.f32 %v838, %v903
        %v936 = vadd.f32 %v839, %v904
        %v937 = vadd.f32 %v840, %v905
        %v938 = vadd.f32 %v841, %v906
        %v939 = vadd.f32 %v842, %v907
        %v940 = vadd.f32 %v843, %v908
        %v941 = vadd.f32 %v844, %v909
        %v942 = vadd.f32 %v845, %v910
        %v943 = vadd.f32 %v846, %v911
        %v944 = vadd.f32 %v847, %v912
        %v945 = vadd.f32 %v848, %v913
        %v946 = vadd.f32 %v849, %v914
        %v947 = vadd.f32 %v850, %v915
        %v948 = vadd.f32 %v851, %v916
        %v949 = vld [vmem:[%s558 + $0x1] sm:$0xff]
        %v950 = vld [vmem:[%s558 + $0x9] sm:$0xff]
        %v951 = vld [vmem:[%s558 + $0x19] sm:$0xff]
        %v952 = vld [vmem:[%s558 + $0x21] sm:$0xff]
        %v953 = vld [vmem:[%s558 + $0x31] sm:$0xff]
        %v954 = vld [vmem:[%s558 + $0x39] sm:$0xff]
        %v955 = vld [vmem:[%s558 + $0x49] sm:$0xff]
        %v956 = vld [vmem:[%s558 + $0x51] sm:$0xff]
        %v957 = vld [vmem:[%s558 + $0x61] sm:$0xff]
        %v958 = vld [vmem:[%s558 + $0x69] sm:$0xff]
        %v959 = vld [vmem:[%s558 + $0x79] sm:$0xff]
        %v960 = vld [vmem:[%s558 + $0x81] sm:$0xff]
        %v961 = vld [vmem:[%s558 + $0x91] sm:$0xff]
        %v962 = vld [vmem:[%s558 + $0x99] sm:$0xff]
        %v963 = vld [vmem:[%s558 + $0xa9] sm:$0xff]
        %v964 = vld [vmem:[%s558 + $0xb1] sm:$0xff]
        %v965 = vld [vmem:[%s558 + $0xc1] sm:$0xff]
        %v966 = vld [vmem:[%s558 + $0xc9] sm:$0xff]
        %v967 = vld [vmem:[%s558 + $0xd9] sm:$0xff]
        %v968 = vld [vmem:[%s558 + $0xe1] sm:$0xff]
        %v969 = vld [vmem:[%s558 + $0xf1] sm:$0xff]
        %v970 = vld [vmem:[%s558 + $0xf9] sm:$0xff]
        %v971 = vld [vmem:[%s558 + $0x109] sm:$0xff]
        %v972 = vld [vmem:[%s558 + $0x111] sm:$0xff]
        %v973 = vld [vmem:[%s558 + $0x121] sm:$0xff]
        %v974 = vld [vmem:[%s558 + $0x129] sm:$0xff]
        %v975 = vld [vmem:[%s558 + $0x139] sm:$0xff]
        %v976 = vld [vmem:[%s558 + $0x141] sm:$0xff]
        %v977 = vld [vmem:[%s558 + $0x151] sm:$0xff]
        %v978 = vld [vmem:[%s558 + $0x159] sm:$0xff]
        %v979 = vld [vmem:[%s558 + $0x169] sm:$0xff]
        %v980 = vld [vmem:[%s558 + $0x171] sm:$0xff]
        %v981 = vperm.slane %v591, 4
        %v982 = vmul.f32 %v949, %v981
        %v983 = vmul.f32 %v950, %v981
        %v984 = vmul.f32 %v951, %v981
        %v985 = vmul.f32 %v952, %v981
        %v986 = vmul.f32 %v953, %v981
        %v987 = vmul.f32 %v954, %v981
        %v988 = vmul.f32 %v955, %v981
        %v989 = vmul.f32 %v956, %v981
        %v990 = vmul.f32 %v957, %v981
        %v991 = vmul.f32 %v958, %v981
        %v992 = vmul.f32 %v959, %v981
        %v993 = vmul.f32 %v960, %v981
        %v994 = vmul.f32 %v961, %v981
        %v995 = vmul.f32 %v962, %v981
        %v996 = vmul.f32 %v963, %v981
        %v997 = vmul.f32 %v964, %v981
        %v998 = vmul.f32 %v965, %v981
        %v999 = vmul.f32 %v966, %v981
        %v1000 = vmul.f32 %v967, %v981
        %v1001 = vmul.f32 %v968, %v981
        %v1002 = vmul.f32 %v969, %v981
        %v1003 = vmul.f32 %v970, %v981
        %v1004 = vmul.f32 %v971, %v981
        %v1005 = vmul.f32 %v972, %v981
        %v1006 = vmul.f32 %v973, %v981
        %v1007 = vmul.f32 %v974, %v981
        %v1008 = vmul.f32 %v975, %v981
        %v1009 = vmul.f32 %v976, %v981
        %v1010 = vmul.f32 %v977, %v981
        %v1011 = vmul.f32 %v978, %v981
        %v1012 = vmul.f32 %v979, %v981
        %v1013 = vmul.f32 %v980, %v981
        %v1014 = vadd.f32 %v917, %v982
        %v1015 = vadd.f32 %v918, %v983
        %v1016 = vadd.f32 %v919, %v984
        %v1017 = vadd.f32 %v920, %v985
        %v1018 = vadd.f32 %v921, %v986
        %v1019 = vadd.f32 %v922, %v987
        %v1020 = vadd.f32 %v923, %v988
        %v1021 = vadd.f32 %v924, %v989
        %v1022 = vadd.f32 %v925, %v990
        %v1023 = vadd.f32 %v926, %v991
        %v1024 = vadd.f32 %v927, %v992
        %v1025 = vadd.f32 %v928, %v993
        %v1026 = vadd.f32 %v929, %v994
        %v1027 = vadd.f32 %v930, %v995
        %v1028 = vadd.f32 %v931, %v996
        %v1029 = vadd.f32 %v932, %v997
        %v1030 = vadd.f32 %v933, %v998
        %v1031 = vadd.f32 %v934, %v999
        %v1032 = vadd.f32 %v935, %v1000
        %v1033 = vadd.f32 %v936, %v1001
        %v1034 = vadd.f32 %v937, %v1002
        %v1035 = vadd.f32 %v938, %v1003
        %v1036 = vadd.f32 %v939, %v1004
        %v1037 = vadd.f32 %v940, %v1005
        %v1038 = vadd.f32 %v941, %v1006
        %v1039 = vadd.f32 %v942, %v1007
        %v1040 = vadd.f32 %v943, %v1008
        %v1041 = vadd.f32 %v944, %v1009
        %v1042 = vadd.f32 %v945, %v1010
        %v1043 = vadd.f32 %v946, %v1011
        %v1044 = vadd.f32 %v947, %v1012
        %v1045 = vadd.f32 %v948, %v1013
        %v1046 = vld [vmem:[%s558 + $0x2] sm:$0xff]
        %v1047 = vld [vmem:[%s558 + $0xa] sm:$0xff]
        %v1048 = vld [vmem:[%s558 + $0x1a] sm:$0xff]
        %v1049 = vld [vmem:[%s558 + $0x22] sm:$0xff]
        %v1050 = vld [vmem:[%s558 + $0x32] sm:$0xff]
        %v1051 = vld [vmem:[%s558 + $0x3a] sm:$0xff]
        %v1052 = vld [vmem:[%s558 + $0x4a] sm:$0xff]
        %v1053 = vld [vmem:[%s558 + $0x52] sm:$0xff]
        %v1054 = vld [vmem:[%s558 + $0x62] sm:$0xff]
        %v1055 = vld [vmem:[%s558 + $0x6a] sm:$0xff]
        %v1056 = vld [vmem:[%s558 + $0x7a] sm:$0xff]
        %v1057 = vld [vmem:[%s558 + $0x82] sm:$0xff]
        %v1058 = vld [vmem:[%s558 + $0x92] sm:$0xff]
        %v1059 = vld [vmem:[%s558 + $0x9a] sm:$0xff]
        %v1060 = vld [vmem:[%s558 + $0xaa] sm:$0xff]
        %v1061 = vld [vmem:[%s558 + $0xb2] sm:$0xff]
        %v1062 = vld [vmem:[%s558 + $0xc2] sm:$0xff]
        %v1063 = vld [vmem:[%s558 + $0xca] sm:$0xff]
        %v1064 = vld [vmem:[%s558 + $0xda] sm:$0xff]
        %v1065 = vld [vmem:[%s558 + $0xe2] sm:$0xff]
        %v1066 = vld [vmem:[%s558 + $0xf2] sm:$0xff]
        %v1067 = vld [vmem:[%s558 + $0xfa] sm:$0xff]
        %v1068 = vld [vmem:[%s558 + $0x10a] sm:$0xff]
        %v1069 = vld [vmem:[%s558 + $0x112] sm:$0xff]
        %v1070 = vld [vmem:[%s558 + $0x122] sm:$0xff]
        %v1071 = vld [vmem:[%s558 + $0x12a] sm:$0xff]
        %v1072 = vld [vmem:[%s558 + $0x13a] sm:$0xff]
        %v1073 = vld [vmem:[%s558 + $0x142] sm:$0xff]
        %v1074 = vld [vmem:[%s558 + $0x152] sm:$0xff]
        %v1075 = vld [vmem:[%s558 + $0x15a] sm:$0xff]
        %v1076 = vld [vmem:[%s558 + $0x16a] sm:$0xff]
        %v1077 = vld [vmem:[%s558 + $0x172] sm:$0xff]
        %v1078 = vperm.slane %v591, 5
        %v1079 = vmul.f32 %v1046, %v1078
        %v1080 = vmul.f32 %v1047, %v1078
        %v1081 = vmul.f32 %v1048, %v1078
        %v1082 = vmul.f32 %v1049, %v1078
        %v1083 = vmul.f32 %v1050, %v1078
        %v1084 = vmul.f32 %v1051, %v1078
        %v1085 = vmul.f32 %v1052, %v1078
        %v1086 = vmul.f32 %v1053, %v1078
        %v1087 = vmul.f32 %v1054, %v1078
        %v1088 = vmul.f32 %v1055, %v1078
        %v1089 = vmul.f32 %v1056, %v1078
        %v1090 = vmul.f32 %v1057, %v1078
        %v1091 = vmul.f32 %v1058, %v1078
        %v1092 = vmul.f32 %v1059, %v1078
        %v1093 = vmul.f32 %v1060, %v1078
        %v1094 = vmul.f32 %v1061, %v1078
        %v1095 = vmul.f32 %v1062, %v1078
        %v1096 = vmul.f32 %v1063, %v1078
        %v1097 = vmul.f32 %v1064, %v1078
        %v1098 = vmul.f32 %v1065, %v1078
        %v1099 = vmul.f32 %v1066, %v1078
        %v1100 = vmul.f32 %v1067, %v1078
        %v1101 = vmul.f32 %v1068, %v1078
        %v1102 = vmul.f32 %v1069, %v1078
        %v1103 = vmul.f32 %v1070, %v1078
        %v1104 = vmul.f32 %v1071, %v1078
        %v1105 = vmul.f32 %v1072, %v1078
        %v1106 = vmul.f32 %v1073, %v1078
        %v1107 = vmul.f32 %v1074, %v1078
        %v1108 = vmul.f32 %v1075, %v1078
        %v1109 = vmul.f32 %v1076, %v1078
        %v1110 = vmul.f32 %v1077, %v1078
        %v1111 = vadd.f32 %v1014, %v1079
        %v1112 = vadd.f32 %v1015, %v1080
        %v1113 = vadd.f32 %v1016, %v1081
        %v1114 = vadd.f32 %v1017, %v1082
        %v1115 = vadd.f32 %v1018, %v1083
        %v1116 = vadd.f32 %v1019, %v1084
        %v1117 = vadd.f32 %v1020, %v1085
        %v1118 = vadd.f32 %v1021, %v1086
        %v1119 = vadd.f32 %v1022, %v1087
        %v1120 = vadd.f32 %v1023, %v1088
        %v1121 = vadd.f32 %v1024, %v1089
        %v1122 = vadd.f32 %v1025, %v1090
        %v1123 = vadd.f32 %v1026, %v1091
        %v1124 = vadd.f32 %v1027, %v1092
        %v1125 = vadd.f32 %v1028, %v1093
        %v1126 = vadd.f32 %v1029, %v1094
        %v1127 = vadd.f32 %v1030, %v1095
        %v1128 = vadd.f32 %v1031, %v1096
        %v1129 = vadd.f32 %v1032, %v1097
        %v1130 = vadd.f32 %v1033, %v1098
        %v1131 = vadd.f32 %v1034, %v1099
        %v1132 = vadd.f32 %v1035, %v1100
        %v1133 = vadd.f32 %v1036, %v1101
        %v1134 = vadd.f32 %v1037, %v1102
        %v1135 = vadd.f32 %v1038, %v1103
        %v1136 = vadd.f32 %v1039, %v1104
        %v1137 = vadd.f32 %v1040, %v1105
        %v1138 = vadd.f32 %v1041, %v1106
        %v1139 = vadd.f32 %v1042, %v1107
        %v1140 = vadd.f32 %v1043, %v1108
        %v1141 = vadd.f32 %v1044, %v1109
        %v1142 = vadd.f32 %v1045, %v1110
        %s1143 = scalar_lea.vmem [#allocation2], 48
        %v1144 = vld [vmem:[%s1143] sm:$0xff]
        %v1145 = vld [vmem:[%s1143 + $0x8] sm:$0xff]
        %v1146 = vld [vmem:[%s1143 + $0x18] sm:$0xff]
        %v1147 = vld [vmem:[%s1143 + $0x20] sm:$0xff]
        %v1148 = vld [vmem:[%s1143 + $0x30] sm:$0xff]
        %v1149 = vld [vmem:[%s1143 + $0x38] sm:$0xff]
        %v1150 = vld [vmem:[%s1143 + $0x48] sm:$0xff]
        %v1151 = vld [vmem:[%s1143 + $0x50] sm:$0xff]
        %v1152 = vld [vmem:[%s1143 + $0x60] sm:$0xff]
        %v1153 = vld [vmem:[%s1143 + $0x68] sm:$0xff]
        %v1154 = vld [vmem:[%s1143 + $0x78] sm:$0xff]
        %v1155 = vld [vmem:[%s1143 + $0x80] sm:$0xff]
        %v1156 = vld [vmem:[%s1143 + $0x90] sm:$0xff]
        %v1157 = vld [vmem:[%s1143 + $0x98] sm:$0xff]
        %v1158 = vld [vmem:[%s1143 + $0xa8] sm:$0xff]
        %v1159 = vld [vmem:[%s1143 + $0xb0] sm:$0xff]
        %v1160 = vld [vmem:[%s1143 + $0xc0] sm:$0xff]
        %v1161 = vld [vmem:[%s1143 + $0xc8] sm:$0xff]
        %v1162 = vld [vmem:[%s1143 + $0xd8] sm:$0xff]
        %v1163 = vld [vmem:[%s1143 + $0xe0] sm:$0xff]
        %v1164 = vld [vmem:[%s1143 + $0xf0] sm:$0xff]
        %v1165 = vld [vmem:[%s1143 + $0xf8] sm:$0xff]
        %v1166 = vld [vmem:[%s1143 + $0x108] sm:$0xff]
        %v1167 = vld [vmem:[%s1143 + $0x110] sm:$0xff]
        %v1168 = vld [vmem:[%s1143 + $0x120] sm:$0xff]
        %v1169 = vld [vmem:[%s1143 + $0x128] sm:$0xff]
        %v1170 = vld [vmem:[%s1143 + $0x138] sm:$0xff]
        %v1171 = vld [vmem:[%s1143 + $0x140] sm:$0xff]
        %v1172 = vld [vmem:[%s1143 + $0x150] sm:$0xff]
        %v1173 = vld [vmem:[%s1143 + $0x158] sm:$0xff]
        %v1174 = vld [vmem:[%s1143 + $0x168] sm:$0xff]
        %v1175 = vld [vmem:[%s1143 + $0x170] sm:$0xff]
        %v1176 = vperm.slane %v591, 6
        %v1177 = vmul.f32 %v1144, %v1176
        %v1178 = vmul.f32 %v1145, %v1176
        %v1179 = vmul.f32 %v1146, %v1176
        %v1180 = vmul.f32 %v1147, %v1176
        %v1181 = vmul.f32 %v1148, %v1176
        %v1182 = vmul.f32 %v1149, %v1176
        %v1183 = vmul.f32 %v1150, %v1176
        %v1184 = vmul.f32 %v1151, %v1176
        %v1185 = vmul.f32 %v1152, %v1176
        %v1186 = vmul.f32 %v1153, %v1176
        %v1187 = vmul.f32 %v1154, %v1176
        %v1188 = vmul.f32 %v1155, %v1176
        %v1189 = vmul.f32 %v1156, %v1176
        %v1190 = vmul.f32 %v1157, %v1176
        %v1191 = vmul.f32 %v1158, %v1176
        %v1192 = vmul.f32 %v1159, %v1176
        %v1193 = vmul.f32 %v1160, %v1176
        %v1194 = vmul.f32 %v1161, %v1176
        %v1195 = vmul.f32 %v1162, %v1176
        %v1196 = vmul.f32 %v1163, %v1176
        %v1197 = vmul.f32 %v1164, %v1176
        %v1198 = vmul.f32 %v1165, %v1176
        %v1199 = vmul.f32 %v1166, %v1176
        %v1200 = vmul.f32 %v1167, %v1176
        %v1201 = vmul.f32 %v1168, %v1176
        %v1202 = vmul.f32 %v1169, %v1176
        %v1203 = vmul.f32 %v1170, %v1176
        %v1204 = vmul.f32 %v1171, %v1176
        %v1205 = vmul.f32 %v1172, %v1176
        %v1206 = vmul.f32 %v1173, %v1176
        %v1207 = vmul.f32 %v1174, %v1176
        %v1208 = vmul.f32 %v1175, %v1176
        %v1209 = vadd.f32 %v1111, %v1177
        %v1210 = vadd.f32 %v1112, %v1178
        %v1211 = vadd.f32 %v1113, %v1179
        %v1212 = vadd.f32 %v1114, %v1180
        %v1213 = vadd.f32 %v1115, %v1181
        %v1214 = vadd.f32 %v1116, %v1182
        %v1215 = vadd.f32 %v1117, %v1183
        %v1216 = vadd.f32 %v1118, %v1184
        %v1217 = vadd.f32 %v1119, %v1185
        %v1218 = vadd.f32 %v1120, %v1186
        %v1219 = vadd.f32 %v1121, %v1187
        %v1220 = vadd.f32 %v1122, %v1188
        %v1221 = vadd.f32 %v1123, %v1189
        %v1222 = vadd.f32 %v1124, %v1190
        %v1223 = vadd.f32 %v1125, %v1191
        %v1224 = vadd.f32 %v1126, %v1192
        %v1225 = vadd.f32 %v1127, %v1193
        %v1226 = vadd.f32 %v1128, %v1194
        %v1227 = vadd.f32 %v1129, %v1195
        %v1228 = vadd.f32 %v1130, %v1196
        %v1229 = vadd.f32 %v1131, %v1197
        %v1230 = vadd.f32 %v1132, %v1198
        %v1231 = vadd.f32 %v1133, %v1199
        %v1232 = vadd.f32 %v1134, %v1200
        %v1233 = vadd.f32 %v1135, %v1201
        %v1234 = vadd.f32 %v1136, %v1202
        %v1235 = vadd.f32 %v1137, %v1203
        %v1236 = vadd.f32 %v1138, %v1204
        %v1237 = vadd.f32 %v1139, %v1205
        %v1238 = vadd.f32 %v1140, %v1206
        %v1239 = vadd.f32 %v1141, %v1207
        %v1240 = vadd.f32 %v1142, %v1208
        %v1241 = vld [vmem:[%s1143 + $0x1] sm:$0xff]
        %v1242 = vld [vmem:[%s1143 + $0x9] sm:$0xff]
        %v1243 = vld [vmem:[%s1143 + $0x19] sm:$0xff]
        %v1244 = vld [vmem:[%s1143 + $0x21] sm:$0xff]
        %v1245 = vld [vmem:[%s1143 + $0x31] sm:$0xff]
        %v1246 = vld [vmem:[%s1143 + $0x39] sm:$0xff]
        %v1247 = vld [vmem:[%s1143 + $0x49] sm:$0xff]
        %v1248 = vld [vmem:[%s1143 + $0x51] sm:$0xff]
        %v1249 = vld [vmem:[%s1143 + $0x61] sm:$0xff]
        %v1250 = vld [vmem:[%s1143 + $0x69] sm:$0xff]
        %v1251 = vld [vmem:[%s1143 + $0x79] sm:$0xff]
        %v1252 = vld [vmem:[%s1143 + $0x81] sm:$0xff]
        %v1253 = vld [vmem:[%s1143 + $0x91] sm:$0xff]
        %v1254 = vld [vmem:[%s1143 + $0x99] sm:$0xff]
        %v1255 = vld [vmem:[%s1143 + $0xa9] sm:$0xff]
        %v1256 = vld [vmem:[%s1143 + $0xb1] sm:$0xff]
        %v1257 = vld [vmem:[%s1143 + $0xc1] sm:$0xff]
        %v1258 = vld [vmem:[%s1143 + $0xc9] sm:$0xff]
        %v1259 = vld [vmem:[%s1143 + $0xd9] sm:$0xff]
        %v1260 = vld [vmem:[%s1143 + $0xe1] sm:$0xff]
        %v1261 = vld [vmem:[%s1143 + $0xf1] sm:$0xff]
        %v1262 = vld [vmem:[%s1143 + $0xf9] sm:$0xff]
        %v1263 = vld [vmem:[%s1143 + $0x109] sm:$0xff]
        %v1264 = vld [vmem:[%s1143 + $0x111] sm:$0xff]
        %v1265 = vld [vmem:[%s1143 + $0x121] sm:$0xff]
        %v1266 = vld [vmem:[%s1143 + $0x129] sm:$0xff]
        %v1267 = vld [vmem:[%s1143 + $0x139] sm:$0xff]
        %v1268 = vld [vmem:[%s1143 + $0x141] sm:$0xff]
        %v1269 = vld [vmem:[%s1143 + $0x151] sm:$0xff]
        %v1270 = vld [vmem:[%s1143 + $0x159] sm:$0xff]
        %v1271 = vld [vmem:[%s1143 + $0x169] sm:$0xff]
        %v1272 = vld [vmem:[%s1143 + $0x171] sm:$0xff]
        %v1273 = vperm.slane %v591, 7
        %v1274 = vmul.f32 %v1241, %v1273
        %v1275 = vmul.f32 %v1242, %v1273
        %v1276 = vmul.f32 %v1243, %v1273
        %v1277 = vmul.f32 %v1244, %v1273
        %v1278 = vmul.f32 %v1245, %v1273
        %v1279 = vmul.f32 %v1246, %v1273
        %v1280 = vmul.f32 %v1247, %v1273
        %v1281 = vmul.f32 %v1248, %v1273
        %v1282 = vmul.f32 %v1249, %v1273
        %v1283 = vmul.f32 %v1250, %v1273
        %v1284 = vmul.f32 %v1251, %v1273
        %v1285 = vmul.f32 %v1252, %v1273
        %v1286 = vmul.f32 %v1253, %v1273
        %v1287 = vmul.f32 %v1254, %v1273
        %v1288 = vmul.f32 %v1255, %v1273
        %v1289 = vmul.f32 %v1256, %v1273
        %v1290 = vmul.f32 %v1257, %v1273
        %v1291 = vmul.f32 %v1258, %v1273
        %v1292 = vmul.f32 %v1259, %v1273
        %v1293 = vmul.f32 %v1260, %v1273
        %v1294 = vmul.f32 %v1261, %v1273
        %v1295 = vmul.f32 %v1262, %v1273
        %v1296 = vmul.f32 %v1263, %v1273
        %v1297 = vmul.f32 %v1264, %v1273
        %v1298 = vmul.f32 %v1265, %v1273
        %v1299 = vmul.f32 %v1266, %v1273
        %v1300 = vmul.f32 %v1267, %v1273
        %v1301 = vmul.f32 %v1268, %v1273
        %v1302 = vmul.f32 %v1269, %v1273
        %v1303 = vmul.f32 %v1270, %v1273
        %v1304 = vmul.f32 %v1271, %v1273
        %v1305 = vmul.f32 %v1272, %v1273
        %v1306 = vadd.f32 %v1209, %v1274
        %v1307 = vadd.f32 %v1210, %v1275
        %v1308 = vadd.f32 %v1211, %v1276
        %v1309 = vadd.f32 %v1212, %v1277
        %v1310 = vadd.f32 %v1213, %v1278
        %v1311 = vadd.f32 %v1214, %v1279
        %v1312 = vadd.f32 %v1215, %v1280
        %v1313 = vadd.f32 %v1216, %v1281
        %v1314 = vadd.f32 %v1217, %v1282
        %v1315 = vadd.f32 %v1218, %v1283
        %v1316 = vadd.f32 %v1219, %v1284
        %v1317 = vadd.f32 %v1220, %v1285
        %v1318 = vadd.f32 %v1221, %v1286
        %v1319 = vadd.f32 %v1222, %v1287
        %v1320 = vadd.f32 %v1223, %v1288
        %v1321 = vadd.f32 %v1224, %v1289
        %v1322 = vadd.f32 %v1225, %v1290
        %v1323 = vadd.f32 %v1226, %v1291
        %v1324 = vadd.f32 %v1227, %v1292
        %v1325 = vadd.f32 %v1228, %v1293
        %v1326 = vadd.f32 %v1229, %v1294
        %v1327 = vadd.f32 %v1230, %v1295
        %v1328 = vadd.f32 %v1231, %v1296
        %v1329 = vadd.f32 %v1232, %v1297
        %v1330 = vadd.f32 %v1233, %v1298
        %v1331 = vadd.f32 %v1234, %v1299
        %v1332 = vadd.f32 %v1235, %v1300
        %v1333 = vadd.f32 %v1236, %v1301
        %v1334 = vadd.f32 %v1237, %v1302
        %v1335 = vadd.f32 %v1238, %v1303
        %v1336 = vadd.f32 %v1239, %v1304
        %v1337 = vadd.f32 %v1240, %v1305
        %v1338 = vld [vmem:[%s1143 + $0x2] sm:$0xff]
        %v1339 = vld [vmem:[%s1143 + $0xa] sm:$0xff]
        %v1340 = vld [vmem:[%s1143 + $0x1a] sm:$0xff]
        %v1341 = vld [vmem:[%s1143 + $0x22] sm:$0xff]
        %v1342 = vld [vmem:[%s1143 + $0x32] sm:$0xff]
        %v1343 = vld [vmem:[%s1143 + $0x3a] sm:$0xff]
        %v1344 = vld [vmem:[%s1143 + $0x4a] sm:$0xff]
        %v1345 = vld [vmem:[%s1143 + $0x52] sm:$0xff]
        %v1346 = vld [vmem:[%s1143 + $0x62] sm:$0xff]
        %v1347 = vld [vmem:[%s1143 + $0x6a] sm:$0xff]
        %v1348 = vld [vmem:[%s1143 + $0x7a] sm:$0xff]
        %v1349 = vld [vmem:[%s1143 + $0x82] sm:$0xff]
        %v1350 = vld [vmem:[%s1143 + $0x92] sm:$0xff]
        %v1351 = vld [vmem:[%s1143 + $0x9a] sm:$0xff]
        %v1352 = vld [vmem:[%s1143 + $0xaa] sm:$0xff]
        %v1353 = vld [vmem:[%s1143 + $0xb2] sm:$0xff]
        %v1354 = vld [vmem:[%s1143 + $0xc2] sm:$0xff]
        %v1355 = vld [vmem:[%s1143 + $0xca] sm:$0xff]
        %v1356 = vld [vmem:[%s1143 + $0xda] sm:$0xff]
        %v1357 = vld [vmem:[%s1143 + $0xe2] sm:$0xff]
        %v1358 = vld [vmem:[%s1143 + $0xf2] sm:$0xff]
        %v1359 = vld [vmem:[%s1143 + $0xfa] sm:$0xff]
        %v1360 = vld [vmem:[%s1143 + $0x10a] sm:$0xff]
        %v1361 = vld [vmem:[%s1143 + $0x112] sm:$0xff]
        %v1362 = vld [vmem:[%s1143 + $0x122] sm:$0xff]
        %v1363 = vld [vmem:[%s1143 + $0x12a] sm:$0xff]
        %v1364 = vld [vmem:[%s1143 + $0x13a] sm:$0xff]
        %v1365 = vld [vmem:[%s1143 + $0x142] sm:$0xff]
        %v1366 = vld [vmem:[%s1143 + $0x152] sm:$0xff]
        %v1367 = vld [vmem:[%s1143 + $0x15a] sm:$0xff]
        %v1368 = vld [vmem:[%s1143 + $0x16a] sm:$0xff]
        %v1369 = vld [vmem:[%s1143 + $0x172] sm:$0xff]
        %v1370 = vperm.slane %v592, 0
        %v1371 = vmul.f32 %v1338, %v1370
        %v1372 = vmul.f32 %v1339, %v1370
        %v1373 = vmul.f32 %v1340, %v1370
        %v1374 = vmul.f32 %v1341, %v1370
        %v1375 = vmul.f32 %v1342, %v1370
        %v1376 = vmul.f32 %v1343, %v1370
        %v1377 = vmul.f32 %v1344, %v1370
        %v1378 = vmul.f32 %v1345, %v1370
        %v1379 = vmul.f32 %v1346, %v1370
        %v1380 = vmul.f32 %v1347, %v1370
        %v1381 = vmul.f32 %v1348, %v1370
        %v1382 = vmul.f32 %v1349, %v1370
        %v1383 = vmul.f32 %v1350, %v1370
        %v1384 = vmul.f32 %v1351, %v1370
        %v1385 = vmul.f32 %v1352, %v1370
        %v1386 = vmul.f32 %v1353, %v1370
        %v1387 = vmul.f32 %v1354, %v1370
        %v1388 = vmul.f32 %v1355, %v1370
        %v1389 = vmul.f32 %v1356, %v1370
        %v1390 = vmul.f32 %v1357, %v1370
        %v1391 = vmul.f32 %v1358, %v1370
        %v1392 = vmul.f32 %v1359, %v1370
        %v1393 = vmul.f32 %v1360, %v1370
        %v1394 = vmul.f32 %v1361, %v1370
        %v1395 = vmul.f32 %v1362, %v1370
        %v1396 = vmul.f32 %v1363, %v1370
        %v1397 = vmul.f32 %v1364, %v1370
        %v1398 = vmul.f32 %v1365, %v1370
        %v1399 = vmul.f32 %v1366, %v1370
        %v1400 = vmul.f32 %v1367, %v1370
        %v1401 = vmul.f32 %v1368, %v1370
        %v1402 = vmul.f32 %v1369, %v1370
        %v1403 = vadd.f32 %v1306, %v1371
        %v1404 = vadd.f32 %v1307, %v1372
        %v1405 = vadd.f32 %v1308, %v1373
        %v1406 = vadd.f32 %v1309, %v1374
        %v1407 = vadd.f32 %v1310, %v1375
        %v1408 = vadd.f32 %v1311, %v1376
        %v1409 = vadd.f32 %v1312, %v1377
        %v1410 = vadd.f32 %v1313, %v1378
        %v1411 = vadd.f32 %v1314, %v1379
        %v1412 = vadd.f32 %v1315, %v1380
        %v1413 = vadd.f32 %v1316, %v1381
        %v1414 = vadd.f32 %v1317, %v1382
        %v1415 = vadd.f32 %v1318, %v1383
        %v1416 = vadd.f32 %v1319, %v1384
        %v1417 = vadd.f32 %v1320, %v1385
        %v1418 = vadd.f32 %v1321, %v1386
        %v1419 = vadd.f32 %v1322, %v1387
        %v1420 = vadd.f32 %v1323, %v1388
        %v1421 = vadd.f32 %v1324, %v1389
        %v1422 = vadd.f32 %v1325, %v1390
        %v1423 = vadd.f32 %v1326, %v1391
        %v1424 = vadd.f32 %v1327, %v1392
        %v1425 = vadd.f32 %v1328, %v1393
        %v1426 = vadd.f32 %v1329, %v1394
        %v1427 = vadd.f32 %v1330, %v1395
        %v1428 = vadd.f32 %v1331, %v1396
        %v1429 = vadd.f32 %v1332, %v1397
        %v1430 = vadd.f32 %v1333, %v1398
        %v1431 = vadd.f32 %v1334, %v1399
        %v1432 = vadd.f32 %v1335, %v1400
        %v1433 = vadd.f32 %v1336, %v1401
        %v1434 = vadd.f32 %v1337, %v1402
        %v1435 = vperm.slane %v341, 1
        %v1436 = vadd.f32 %v1403, %v1435
        %v1437 = vadd.f32 %v1404, %v1435
        %v1438 = vadd.f32 %v1405, %v1435
        %v1439 = vadd.f32 %v1406, %v1435
        %v1440 = vadd.f32 %v1407, %v1435
        %v1441 = vadd.f32 %v1408, %v1435
        %v1442 = vadd.f32 %v1409, %v1435
        %v1443 = vadd.f32 %v1410, %v1435
        %v1444 = vadd.f32 %v1411, %v1435
        %v1445 = vadd.f32 %v1412, %v1435
        %v1446 = vadd.f32 %v1413, %v1435
        %v1447 = vadd.f32 %v1414, %v1435
        %v1448 = vadd.f32 %v1415, %v1435
        %v1449 = vadd.f32 %v1416, %v1435
        %v1450 = vadd.f32 %v1417, %v1435
        %v1451 = vadd.f32 %v1418, %v1435
        %v1452 = vadd.f32 %v1419, %v1435
        %v1453 = vadd.f32 %v1420, %v1435
        %v1454 = vadd.f32 %v1421, %v1435
        %v1455 = vadd.f32 %v1422, %v1435
        %v1456 = vadd.f32 %v1423, %v1435
        %v1457 = vadd.f32 %v1424, %v1435
        %v1458 = vadd.f32 %v1425, %v1435
        %v1459 = vadd.f32 %v1426, %v1435
        %v1460 = vadd.f32 %v1427, %v1435
        %v1461 = vadd.f32 %v1428, %v1435
        %v1462 = vadd.f32 %v1429, %v1435
        %v1463 = vadd.f32 %v1430, %v1435
        %v1464 = vadd.f32 %v1431, %v1435
        %v1465 = vadd.f32 %v1432, %v1435
        %v1466 = vadd.f32 %v1433, %v1435
        %v1467 = vadd.f32 %v1434, %v1435
        %v1468 = vld [vmem:[#allocation9] sm:$0xff]
        %v1469 = vld [vmem:[#allocation9 + $0x8] sm:$0xff]
        %v1470 = vld [vmem:[#allocation9 + $0x10] sm:$0xff]
        %v1471 = vld [vmem:[#allocation9 + $0x18] sm:$0xff]
        %v1472 = vld [vmem:[#allocation9 + $0x20] sm:$0xff]
        %v1473 = vld [vmem:[#allocation9 + $0x28] sm:$0xff]
        %v1474 = vld [vmem:[#allocation9 + $0x30] sm:$0xff]
        %v1475 = vld [vmem:[#allocation9 + $0x38] sm:$0xff]
        %v1476 = vld [vmem:[#allocation9 + $0x40] sm:$0xff]
        %v1477 = vld [vmem:[#allocation9 + $0x48] sm:$0xff]
        %v1478 = vld [vmem:[#allocation9 + $0x50] sm:$0xff]
        %v1479 = vld [vmem:[#allocation9 + $0x58] sm:$0xff]
        %v1480 = vld [vmem:[#allocation9 + $0x60] sm:$0xff]
        %v1481 = vld [vmem:[#allocation9 + $0x68] sm:$0xff]
        %v1482 = vld [vmem:[#allocation9 + $0x70] sm:$0xff]
        %v1483 = vld [vmem:[#allocation9 + $0x78] sm:$0xff]
        %v1484 = vperm.slane %v341, 2
        %1485 = vmatpush.msra.mxu0 %v1483
        %1486 = vmatpush.msra.mxu0 %v1482
        %1487 = vmatpush.msra.mxu0 %v1481
        %1488 = vmatpush.msra.mxu0 %v1480
        %1489 = vmatpush.msra.mxu0 %v1479
        %1490 = vmatpush.msra.mxu0 %v1478
        %1491 = vmatpush.msra.mxu0 %v1477
        %1492 = vmatpush.msra.mxu0 %v1476
        %1493 = vmatpush.msra.mxu0 %v1475
        %1494 = vmatpush.msra.mxu0 %v1474
        %1495 = vmatpush.msra.mxu0 %v1473
        %1496 = vmatpush.msra.mxu0 %v1472
        %1497 = vmatpush.msra.mxu0 %v1471
        %1498 = vmatpush.msra.mxu0 %v1470
        %1499 = vmatpush.msra.mxu0 %v1469
        %1500 = vmatpush.msra.mxu0 %v1468
        %1501 = vmatmul.f32.gmra.mxu0 %v1436
        %v1502 = vpop.f32.mrf.mxu0
        %v1503 = vadd.f32 %v1484, %v1502
        %1504 = vmatmul.f32.gmra.mxu0 %v1437
        %v1505 = vpop.f32.mrf.mxu0
        %v1506 = vadd.f32 %v1484, %v1505
        %1507 = vmatmul.f32.gmra.mxu0 %v1438
        %v1508 = vpop.f32.mrf.mxu0
        %v1509 = vadd.f32 %v1484, %v1508
        %1510 = vmatmul.f32.gmra.mxu0 %v1439
        %v1511 = vpop.f32.mrf.mxu0
        %v1512 = vadd.f32 %v1484, %v1511
        %1513 = vmatmul.f32.gmra.mxu0 %v1440
        %v1514 = vpop.f32.mrf.mxu0
        %v1515 = vadd.f32 %v1484, %v1514
        %1516 = vmatmul.f32.gmra.mxu0 %v1441
        %v1517 = vpop.f32.mrf.mxu0
        %v1518 = vadd.f32 %v1484, %v1517
        %1519 = vmatmul.f32.gmra.mxu0 %v1442
        %v1520 = vpop.f32.mrf.mxu0
        %v1521 = vadd.f32 %v1484, %v1520
        %1522 = vmatmul.f32.gmra.mxu0 %v1443
        %v1523 = vpop.f32.mrf.mxu0
        %v1524 = vadd.f32 %v1484, %v1523
        %1525 = vmatmul.f32.gmra.mxu0 %v1444
        %v1526 = vpop.f32.mrf.mxu0
        %v1527 = vadd.f32 %v1484, %v1526
        %1528 = vmatmul.f32.gmra.mxu0 %v1445
        %v1529 = vpop.f32.mrf.mxu0
        %v1530 = vadd.f32 %v1484, %v1529
        %1531 = vmatmul.f32.gmra.mxu0 %v1446
        %v1532 = vpop.f32.mrf.mxu0
        %v1533 = vadd.f32 %v1484, %v1532
        %1534 = vmatmul.f32.gmra.mxu0 %v1447
        %v1535 = vpop.f32.mrf.mxu0
        %v1536 = vadd.f32 %v1484, %v1535
        %1537 = vmatmul.f32.gmra.mxu0 %v1448
        %v1538 = vpop.f32.mrf.mxu0
        %v1539 = vadd.f32 %v1484, %v1538
        %1540 = vmatmul.f32.gmra.mxu0 %v1449
        %v1541 = vpop.f32.mrf.mxu0
        %v1542 = vadd.f32 %v1484, %v1541
        %1543 = vmatmul.f32.gmra.mxu0 %v1450
        %v1544 = vpop.f32.mrf.mxu0
        %v1545 = vadd.f32 %v1484, %v1544
        %1546 = vmatmul.f32.gmra.mxu0 %v1451
        %v1547 = vpop.f32.mrf.mxu0
        %v1548 = vadd.f32 %v1484, %v1547
        %1549 = vmatmul.f32.gmra.mxu0 %v1452
        %v1550 = vpop.f32.mrf.mxu0
        %v1551 = vadd.f32 %v1484, %v1550
        %1552 = vmatmul.f32.gmra.mxu0 %v1453
        %v1553 = vpop.f32.mrf.mxu0
        %v1554 = vadd.f32 %v1484, %v1553
        %1555 = vmatmul.f32.gmra.mxu0 %v1454
        %v1556 = vpop.f32.mrf.mxu0
        %v1557 = vadd.f32 %v1484, %v1556
        %1558 = vmatmul.f32.gmra.mxu0 %v1455
        %v1559 = vpop.f32.mrf.mxu0
        %v1560 = vadd.f32 %v1484, %v1559
        %1561 = vmatmul.f32.gmra.mxu0 %v1456
        %v1562 = vpop.f32.mrf.mxu0
        %v1563 = vadd.f32 %v1484, %v1562
        %1564 = vmatmul.f32.gmra.mxu0 %v1457
        %v1565 = vpop.f32.mrf.mxu0
        %v1566 = vadd.f32 %v1484, %v1565
        %1567 = vmatmul.f32.gmra.mxu0 %v1458
        %v1568 = vpop.f32.mrf.mxu0
        %v1569 = vadd.f32 %v1484, %v1568
        %1570 = vmatmul.f32.gmra.mxu0 %v1459
        %v1571 = vpop.f32.mrf.mxu0
        %v1572 = vadd.f32 %v1484, %v1571
        %1573 = vmatmul.f32.gmra.mxu0 %v1460
        %v1574 = vpop.f32.mrf.mxu0
        %v1575 = vadd.f32 %v1484, %v1574
        %1576 = vmatmul.f32.gmra.mxu0 %v1461
        %v1577 = vpop.f32.mrf.mxu0
        %v1578 = vadd.f32 %v1484, %v1577
        %1579 = vmatmul.f32.gmra.mxu0 %v1462
        %v1580 = vpop.f32.mrf.mxu0
        %v1581 = vadd.f32 %v1484, %v1580
        %1582 = vmatmul.f32.gmra.mxu0 %v1463
        %v1583 = vpop.f32.mrf.mxu0
        %v1584 = vadd.f32 %v1484, %v1583
        %1585 = vmatmul.f32.gmra.mxu0 %v1464
        %v1586 = vpop.f32.mrf.mxu0
        %v1587 = vadd.f32 %v1484, %v1586
        %1588 = vmatmul.f32.gmra.mxu0 %v1465
        %v1589 = vpop.f32.mrf.mxu0
        %v1590 = vadd.f32 %v1484, %v1589
        %1591 = vmatmul.f32.gmra.mxu0 %v1466
        %v1592 = vpop.f32.mrf.mxu0
        %v1593 = vadd.f32 %v1484, %v1592
        %1594 = vmatmul.f32.gmra.mxu0 %v1467
        %v1595 = vpop.f32.mrf.mxu0
        %v1596 = vadd.f32 %v1484, %v1595
        %1597 = vdwg.mxu0
        %v1598 = vmax.f32 %v1503, 0.0
        %v1599 = vmax.f32 %v1506, 0.0
        %v1600 = vmax.f32 %v1509, 0.0
        %v1601 = vmax.f32 %v1512, 0.0
        %v1602 = vmax.f32 %v1515, 0.0
        %v1603 = vmax.f32 %v1518, 0.0
        %v1604 = vmax.f32 %v1521, 0.0
        %v1605 = vmax.f32 %v1524, 0.0
        %v1606 = vmax.f32 %v1527, 0.0
        %v1607 = vmax.f32 %v1530, 0.0
        %v1608 = vmax.f32 %v1533, 0.0
        %v1609 = vmax.f32 %v1536, 0.0
        %v1610 = vmax.f32 %v1539, 0.0
        %v1611 = vmax.f32 %v1542, 0.0
        %v1612 = vmax.f32 %v1545, 0.0
        %v1613 = vmax.f32 %v1548, 0.0
        %v1614 = vmax.f32 %v1551, 0.0
        %v1615 = vmax.f32 %v1554, 0.0
        %v1616 = vmax.f32 %v1557, 0.0
        %v1617 = vmax.f32 %v1560, 0.0
        %v1618 = vmax.f32 %v1563, 0.0
        %v1619 = vmax.f32 %v1566, 0.0
        %v1620 = vmax.f32 %v1569, 0.0
        %v1621 = vmax.f32 %v1572, 0.0
        %v1622 = vmax.f32 %v1575, 0.0
        %v1623 = vmax.f32 %v1578, 0.0
        %v1624 = vmax.f32 %v1581, 0.0
        %v1625 = vmax.f32 %v1584, 0.0
        %v1626 = vmax.f32 %v1587, 0.0
        %v1627 = vmax.f32 %v1590, 0.0
        %v1628 = vmax.f32 %v1593, 0.0
        %v1629 = vmax.f32 %v1596, 0.0
        %1630 = vst [vmem:[%s308] sm:$0xff] %v1598
        %1631 = vst [vmem:[%s308 + $0x8] sm:$0xff] %v1599
        %1632 = vst [vmem:[%s308 + $0x10] sm:$0xff] %v1600
        %1633 = vst [vmem:[%s308 + $0x18] sm:$0xff] %v1601
        %1634 = vst [vmem:[%s308 + $0x20] sm:$0xff] %v1602
        %1635 = vst [vmem:[%s308 + $0x28] sm:$0xff] %v1603
        %1636 = vst [vmem:[%s308 + $0x30] sm:$0xff] %v1604
        %1637 = vst [vmem:[%s308 + $0x38] sm:$0xff] %v1605
        %1638 = vst [vmem:[%s308 + $0x40] sm:$0xff] %v1606
        %1639 = vst [vmem:[%s308 + $0x48] sm:$0xff] %v1607
        %1640 = vst [vmem:[%s308 + $0x50] sm:$0xff] %v1608
        %1641 = vst [vmem:[%s308 + $0x58] sm:$0xff] %v1609
        %1642 = vst [vmem:[%s308 + $0x60] sm:$0xff] %v1610
        %1643 = vst [vmem:[%s308 + $0x68] sm:$0xff] %v1611
        %1644 = vst [vmem:[%s308 + $0x70] sm:$0xff] %v1612
        %1645 = vst [vmem:[%s308 + $0x78] sm:$0xff] %v1613
        %1646 = vst [vmem:[%s308 + $0x80] sm:$0xff] %v1614
        %1647 = vst [vmem:[%s308 + $0x88] sm:$0xff] %v1615
        %1648 = vst [vmem:[%s308 + $0x90] sm:$0xff] %v1616
        %1649 = vst [vmem:[%s308 + $0x98] sm:$0xff] %v1617
        %1650 = vst [vmem:[%s308 + $0xa0] sm:$0xff] %v1618
        %1651 = vst [vmem:[%s308 + $0xa8] sm:$0xff] %v1619
        %1652 = vst [vmem:[%s308 + $0xb0] sm:$0xff] %v1620
        %1653 = vst [vmem:[%s308 + $0xb8] sm:$0xff] %v1621
        %1654 = vst [vmem:[%s308 + $0xc0] sm:$0xff] %v1622
        %1655 = vst [vmem:[%s308 + $0xc8] sm:$0xff] %v1623
        %1656 = vst [vmem:[%s308 + $0xd0] sm:$0xff] %v1624
        %1657 = vst [vmem:[%s308 + $0xd8] sm:$0xff] %v1625
        %1658 = vst [vmem:[%s308 + $0xe0] sm:$0xff] %v1626
        %1659 = vst [vmem:[%s308 + $0xe8] sm:$0xff] %v1627
        %1660 = vst [vmem:[%s308 + $0xf0] sm:$0xff] %v1628
        %1661 = vst [vmem:[%s308 + $0xf8] sm:$0xff] %v1629
        %s1662 = sand.u32 %s142, 1
        %s1663 = scalar_lea.sflag [#allocation5], %s1662
        %s1664 = sand.u32 %s142, 1
        %s1665 = smul.addr %s1664, 256
        %s1666 = scalar_lea.vmem [#allocation12], %s1665
        // Predicated region
        $region61: #{tpu_custom_call.1} parent=39 // pred_check
          %p1667 = pneg %p152
        $region62: #{tpu_custom_call.1} parent=39 // pred_check_branch
          %1669 = sbr.rel (%p1667) target = $region64
        $region63: #{tpu_custom_call.1} parent=39 // pred_region
          %1671 = vsyncadd %s1663, 0
          %s1672 = smul.addr %s24, 32
          %s1673 = smul.addr %s1672, 8
          %s1674 = scalar_lea.hbm %s5, %s1673
          %s1675 = sshll.u32 %s1666, 4
          %s1676 = int_to_ptr.vmem [resolvable:$true] %s1675
          %s1677 = sshll.u32 %s1674, 4
          %s1678 = int_to_ptr.hbm [resolvable:$true] %s1677
          %1683 = dma.vmem_to_hbm [thread:$0]  %s1676, 4096, %s1678, %s1663, 128, 128, 8
        $region64: #{tpu_custom_call.1} parent=39 // pred_fallthru
          _
      $region40: #{tpu_custom_call.1} parent=5 // pred_fallthru
        _
      %p1684 = scmp.le.s32.totalorder 2, %s19
      // Predicated region
      $region65: #{tpu_custom_call.1} parent=5 // pred_check
        %p1685 = pneg %p1684
      $region66: #{tpu_custom_call.1} parent=5 // pred_check_branch
        %1687 = sbr.rel (%p1685) target = $region68
      $region67: #{tpu_custom_call.1} parent=5 // pred_region
        %s1688 = ssub.s32 %s19, 2
        // Predicated region
        $region69: #{tpu_custom_call.1} parent=67 // pred_check
          %p1689 = pneg %p158
        $region70: #{tpu_custom_call.1} parent=67 // pred_check_branch
          %1691 = sbr.rel (%p1689) target = $region72
        $region71: #{tpu_custom_call.1} parent=67 // pred_region
          %s1692 = sand.u32 %s143, 1
          %s1693 = scalar_lea.sflag [#allocation5], %s1692
          %s1694 = sand.u32 %s143, 1
          %s1695 = smul.addr %s1694, 256
          %s1696 = scalar_lea.vmem [#allocation12], %s1695
          %1698 = dma.done %s1693, 4096
        $region72: #{tpu_custom_call.1} parent=67 // pred_fallthru
          _
      $region68: #{tpu_custom_call.1} parent=5 // pred_fallthru
        _
    $region6: #{tpu_custom_call.1} parent=1 // loop_footer
      %s23 = sadd.s32 1, %s19
    $region7: #{tpu_custom_call.1} parent=1 // loop_footer_branch
      %18 = sbr.rel target = $region3
    $region8: #{tpu_custom_call.1} parent=1 // loop_exit
      _
    %1699 = vsyncpa [#allocation4], 1
    %s1700 = scalar_lea.sflag [#allocation4], 1
    %1701 = vsyncpa %s1700, 1
    %1702 = vsyncpa [#allocation7], 1
    %1703 = vsyncpa [#allocation10], 1
    %1704 = vsyncpa [#allocation5], 1
    %s1705 = scalar_lea.sflag [#allocation5], 1
    %1706 = vsyncpa %s1705, 1

</llo_original>
